<compile_context>
chip_gen: v7x
topology: tpu7x:2x2x1
jax: 0.10.0
libtpu: 0.0.40
codegen_flags: <defaults>
</compile_context>

<pallas_src>
import jax
import jax.numpy as jnp
from jax.experimental import pallas as pl
from jax.experimental.pallas import tpu as pltpu

_HIGHEST = jax.lax.Precision.HIGHEST


def dqn_kernel(x_ref, w1_ref, b1_ref, w2_ref, b2_ref, w3_ref, b3_ref, o_ref):
    # Hidden layer 1: Linear + ReLU.  h = W1 @ x : (H1, TB), batch on lanes.
    h = jnp.dot(w1_ref[...], x_ref[...],
                preferred_element_type=jnp.float32, precision=_HIGHEST)
    h = jnp.maximum(h + b1_ref[...], 0.0)
    # Hidden layer 2: Linear + ReLU.
    h = jnp.dot(w2_ref[...], h,
                preferred_element_type=jnp.float32, precision=_HIGHEST)
    h = jnp.maximum(h + b2_ref[...], 0.0)
    # Output layer: Linear (no activation).  q : (A, TB), lane-dense store.
    q = jnp.dot(w3_ref[...], h,
                preferred_element_type=jnp.float32, precision=_HIGHEST)
    o_ref[...] = (q + b3_ref[...]).astype(o_ref.dtype)


def _cdiv(a, b):
    return (a + b - 1) // b


def _round_up(n, m):
    return _cdiv(n, m) * m


def dqn_forward(x, params, *, max_tile=2048, min_grid_steps=1):
    """x: (B, state_size) float32.  params: (w1, b1, w2, b2, w3, b3) with
    w_i shaped (out, in) and b_i shaped (out, 1) (PyTorch nn.Linear layout).
    Set min_grid_steps=2 on v7x to shard the batch across both TensorCores."""
    w1, b1, w2, b2, w3, b3 = params
    B, S = x.shape
    A = w3.shape[0]

    # Batch lives on the lane axis -> tile must be a multiple of 128 lanes.
    Bp = _round_up(max(B, 1), 128)
    steps = max(min_grid_steps, _cdiv(Bp, max_tile))
    TB = _round_up(_cdiv(Bp, steps), 128)
    Bp = _round_up(Bp, TB)
    grid = (Bp // TB,)

    # Pad batch (rows of zeros; their outputs are sliced off) and transpose so
    # the kernel sees (S, Bp) with batch on lanes.
    if Bp != B:
        x = jnp.pad(x, ((0, Bp - B), (0, 0)))
    x_t = x.T  # (S, Bp)

    # Resident parameter specs: constant block index -> single DMA, stays in VMEM.
    def resident(arr):
        return pl.BlockSpec(arr.shape, lambda i: (0, 0))

    out_t = pl.pallas_call(
        dqn_kernel,
        out_shape=jax.ShapeDtypeStruct((A, Bp), jnp.float32),
        grid=grid,
        in_specs=[
            pl.BlockSpec((S, TB), lambda i: (0, i)),   # x: tiled over batch lanes
            resident(w1), resident(b1),
            resident(w2), resident(b2),
            resident(w3), resident(b3),
        ],
        out_specs=pl.BlockSpec((A, TB), lambda i: (0, i)),
        compiler_params=pltpu.CompilerParams(
            dimension_semantics=("parallel",),   # batch tiles shard across TCs (v7x)
            vmem_limit_bytes=32 * 1024 * 1024,   # far above need; safe on v7x 64 MiB
        ),
    )(x_t, w1, b1, w2, b2, w3, b3)

    # Back to (B, A) row-major.
    return out_t[:, :B].T


def init_params(key, state_size, action_size, hidden_layers=(64, 64)):
    """Deterministic init mimicking nn.Linear's U(-1/sqrt(fan_in), 1/sqrt(fan_in)).
    Weights kept in PyTorch (out, in) order; biases as (out, 1)."""
    dims = [state_size] + list(hidden_layers) + [action_size]
    params = []
    for i in range(len(dims) - 1):
        fan_in, fan_out = dims[i], dims[i + 1]
        key, kw, kb = jax.random.split(key, 3)
        bound = 1.0 / (fan_in ** 0.5)
        w = jax.random.uniform(kw, (fan_out, fan_in), jnp.float32, -bound, bound)
        b = jax.random.uniform(kb, (fan_out, 1), jnp.float32, -bound, bound)
        params.extend([w, b])
    return tuple(params)


def dqn_reference(x, params):
    """Plain JAX reference of the PyTorch forward pass."""
    w1, b1, w2, b2, w3, b3 = params
    h = jnp.maximum(x @ w1.T + b1[:, 0], 0.0)
    h = jnp.maximum(h @ w2.T + b2[:, 0], 0.0)
    return h @ w3.T + b3[:, 0]


if __name__ == "__main__":
    key = jax.random.PRNGKey(0)
    state_size, action_size = 8, 4

    key, kp = jax.random.split(key)
    params = init_params(kp, state_size, action_size, hidden_layers=(64, 64))

    # Small demo shape: batch=8 -> padded to 128 lanes, grid of 1.
    key, kx = jax.random.split(key)
    x_small = jax.random.normal(kx, (8, state_size), jnp.float32)
    out_small = dqn_forward(x_small, params)
    jax.block_until_ready(out_small)
    ref_small = dqn_reference(x_small, params)
    assert out_small.shape == (8, action_size)
    assert jnp.allclose(out_small, ref_small, atol=1e-5, rtol=1e-5)

    # Replay-minibatch-sized batch with the default single-step grid
    # (1000 -> 1024 lanes, one tile: resident weights + padding + slicing).
    key, kx2 = jax.random.split(key)
    x_big = jax.random.normal(kx2, (1000, state_size), jnp.float32)
    out_big = dqn_forward(x_big, params)
    jax.block_until_ready(out_big)
    ref_big = dqn_reference(x_big, params)
    assert out_big.shape == (1000, action_size)
    assert jnp.allclose(out_big, ref_big, atol=1e-5, rtol=1e-5)

    # Same batch forced through a multi-step grid (256-lane tiles, 4 steps):
    # exercises the pipelined DMA path and the v7x min_grid_steps knob.
    out_tiled = dqn_forward(x_big, params, max_tile=256, min_grid_steps=2)
    jax.block_until_ready(out_tiled)
    assert out_tiled.shape == (1000, action_size)
    assert jnp.allclose(out_tiled, ref_big, atol=1e-5, rtol=1e-5)

    print("KERNEL_OK")
</pallas_src>

<mosaic_0001>
module attributes {stable_mosaic.version = 11 : i64} {
  func.func @dqn_kernel(%arg0: i32, %arg1: memref<8x128xf32, #tpu.memory_space<vmem>>, %arg2: memref<64x8xf32, #tpu.memory_space<vmem>>, %arg3: memref<64x1xf32, #tpu.memory_space<vmem>>, %arg4: memref<64x64xf32, #tpu.memory_space<vmem>>, %arg5: memref<64x1xf32, #tpu.memory_space<vmem>>, %arg6: memref<4x64xf32, #tpu.memory_space<vmem>>, %arg7: memref<4x1xf32, #tpu.memory_space<vmem>>, %arg8: memref<4x128xf32, #tpu.memory_space<vmem>>) attributes {dimension_semantics = [#tpu.dimension_semantics<parallel>], iteration_bounds = array<i64: 1>, scalar_prefetch = 0 : i64, scratch_operands = 0 : i64, tpu.core_type = #tpu.core_type<tc>, window_params = [{transform_indices = @transform_0, window_bounds = array<i64: 8, 128>}, {pipeline_mode = #tpu.pipeline_mode<synchronous>, transform_indices = @transform_1, window_bounds = array<i64: 64, 8>}, {pipeline_mode = #tpu.pipeline_mode<synchronous>, transform_indices = @transform_2, window_bounds = array<i64: 64, 1>}, {pipeline_mode = #tpu.pipeline_mode<synchronous>, transform_indices = @transform_3, window_bounds = array<i64: 64, 64>}, {pipeline_mode = #tpu.pipeline_mode<synchronous>, transform_indices = @transform_4, window_bounds = array<i64: 64, 1>}, {pipeline_mode = #tpu.pipeline_mode<synchronous>, transform_indices = @transform_5, window_bounds = array<i64: 4, 64>}, {pipeline_mode = #tpu.pipeline_mode<synchronous>, transform_indices = @transform_6, window_bounds = array<i64: 4, 1>}, {transform_indices = @transform_7, window_bounds = array<i64: 4, 128>}]} {
    %c0 = arith.constant 0 : index
    %c0_0 = arith.constant 0 : index
    %0 = vector.load %arg2[%c0, %c0_0] : memref<64x8xf32, #tpu.memory_space<vmem>>, vector<64x8xf32>
    %c0_1 = arith.constant 0 : index
    %c0_2 = arith.constant 0 : index
    %1 = vector.load %arg1[%c0_1, %c0_2] : memref<8x128xf32, #tpu.memory_space<vmem>>, vector<8x128xf32>
    %cst = arith.constant dense<0.000000e+00> : vector<64x128xf32>
    %2 = tpu.matmul %0, %1, %cst {dimension_numbers = #tpu.dot_dimension_numbers<[1], [0], [0], [1], [0, 0, 1, 1], [], []>, precision = #tpu.contract_precision<fp32>} : vector<64x8xf32>, vector<8x128xf32>, vector<64x128xf32> -> vector<64x128xf32>
    %c0_3 = arith.constant 0 : index
    %c0_4 = arith.constant 0 : index
    %3 = vector.load %arg3[%c0_3, %c0_4] : memref<64x1xf32, #tpu.memory_space<vmem>>, vector<64x1xf32>
    %4 = vector.broadcast %3 : vector<64x1xf32> to vector<64x128xf32>
    %5 = arith.addf %2, %4 : vector<64x128xf32>
    %cst_5 = arith.constant 0.000000e+00 : f32
    %6 = vector.broadcast %cst_5 : f32 to vector<64x128xf32>
    %7 = arith.maximumf %5, %6 : vector<64x128xf32>
    %c0_6 = arith.constant 0 : index
    %c0_7 = arith.constant 0 : index
    %8 = vector.load %arg4[%c0_6, %c0_7] : memref<64x64xf32, #tpu.memory_space<vmem>>, vector<64x64xf32>
    %cst_8 = arith.constant dense<0.000000e+00> : vector<64x128xf32>
    %9 = tpu.matmul %8, %7, %cst_8 {dimension_numbers = #tpu.dot_dimension_numbers<[1], [0], [0], [1], [0, 0, 1, 1], [], []>, precision = #tpu.contract_precision<fp32>} : vector<64x64xf32>, vector<64x128xf32>, vector<64x128xf32> -> vector<64x128xf32>
    %c0_9 = arith.constant 0 : index
    %c0_10 = arith.constant 0 : index
    %10 = vector.load %arg5[%c0_9, %c0_10] : memref<64x1xf32, #tpu.memory_space<vmem>>, vector<64x1xf32>
    %11 = vector.broadcast %10 : vector<64x1xf32> to vector<64x128xf32>
    %12 = arith.addf %9, %11 : vector<64x128xf32>
    %cst_11 = arith.constant 0.000000e+00 : f32
    %13 = vector.broadcast %cst_11 : f32 to vector<64x128xf32>
    %14 = arith.maximumf %12, %13 : vector<64x128xf32>
    %c0_12 = arith.constant 0 : index
    %c0_13 = arith.constant 0 : index
    %15 = vector.load %arg6[%c0_12, %c0_13] : memref<4x64xf32, #tpu.memory_space<vmem>>, vector<4x64xf32>
    %cst_14 = arith.constant dense<0.000000e+00> : vector<4x128xf32>
    %16 = tpu.matmul %15, %14, %cst_14 {dimension_numbers = #tpu.dot_dimension_numbers<[1], [0], [0], [1], [0, 0, 1, 1], [], []>, precision = #tpu.contract_precision<fp32>} : vector<4x64xf32>, vector<64x128xf32>, vector<4x128xf32> -> vector<4x128xf32>
    %c0_15 = arith.constant 0 : index
    %c0_16 = arith.constant 0 : index
    %17 = vector.load %arg7[%c0_15, %c0_16] : memref<4x1xf32, #tpu.memory_space<vmem>>, vector<4x1xf32>
    %18 = vector.broadcast %17 : vector<4x1xf32> to vector<4x128xf32>
    %19 = arith.addf %16, %18 : vector<4x128xf32>
    %c0_17 = arith.constant 0 : index
    %c0_18 = arith.constant 0 : index
    %20 = vector.load %arg8[%c0_17, %c0_18] : memref<4x128xf32, #tpu.memory_space<vmem>>, vector<4x128xf32>
    tpu.vector_store %arg8[%c0_17, %c0_18], %19 {strides = array<i32>} : memref<4x128xf32, #tpu.memory_space<vmem>>, vector<4x128xf32>,
    return
  }
  func.func @transform_0(%arg0: i32) -> (i32, i32) {
    %c0_i32 = arith.constant 0 : i32
    %c0_i32_0 = arith.constant 0 : i32
    return %c0_i32, %arg0 : i32, i32
  }
  func.func @transform_1(%arg0: i32) -> (i32, i32) {
    %c0_i32 = arith.constant 0 : i32
    %c0_i32_0 = arith.constant 0 : i32
    %c0_i32_1 = arith.constant 0 : i32
    return %c0_i32, %c0_i32_0 : i32, i32
  }
  func.func @transform_2(%arg0: i32) -> (i32, i32) {
    %c0_i32 = arith.constant 0 : i32
    %c0_i32_0 = arith.constant 0 : i32
    %c0_i32_1 = arith.constant 0 : i32
    return %c0_i32, %c0_i32_0 : i32, i32
  }
  func.func @transform_3(%arg0: i32) -> (i32, i32) {
    %c0_i32 = arith.constant 0 : i32
    %c0_i32_0 = arith.constant 0 : i32
    %c0_i32_1 = arith.constant 0 : i32
    return %c0_i32, %c0_i32_0 : i32, i32
  }
  func.func @transform_4(%arg0: i32) -> (i32, i32) {
    %c0_i32 = arith.constant 0 : i32
    %c0_i32_0 = arith.constant 0 : i32
    %c0_i32_1 = arith.constant 0 : i32
    return %c0_i32, %c0_i32_0 : i32, i32
  }
  func.func @transform_5(%arg0: i32) -> (i32, i32) {
    %c0_i32 = arith.constant 0 : i32
    %c0_i32_0 = arith.constant 0 : i32
    %c0_i32_1 = arith.constant 0 : i32
    return %c0_i32, %c0_i32_0 : i32, i32
  }
  func.func @transform_6(%arg0: i32) -> (i32, i32) {
    %c0_i32 = arith.constant 0 : i32
    %c0_i32_0 = arith.constant 0 : i32
    %c0_i32_1 = arith.constant 0 : i32
    return %c0_i32, %c0_i32_0 : i32, i32
  }
  func.func @transform_7(%arg0: i32) -> (i32, i32) {
    %c0_i32 = arith.constant 0 : i32
    %c0_i32_0 = arith.constant 0 : i32
    return %c0_i32, %arg0 : i32, i32
  }
}

</mosaic_0001>

<llo_original>
// kernel: tpu_custom_call.1
$region0: #{tpu_custom_call.1}
  #allocation0 [shape = 'u32[]', space=smem, size = 0x4, offset = 0x4, fixed_abs, tag = 'smem constant byte address 0x4 - core index']
  #allocation1 [shape = 'u32[144,128]{1,0:T(1,128)}', space=vmem, size = 0x12000, scoped, tag = 'internal scratch']
  %s0 = inlined_call_operand.vmem [shape: f32[8,128], index: 0, kind: input, shape index: {}]
  %s1 = inlined_call_operand.vmem [shape: f32[64,8], index: 1, kind: input, shape index: {}]
  %s2 = inlined_call_operand.vmem [shape: f32[64,1], index: 2, kind: input, shape index: {}]
  %s3 = inlined_call_operand.vmem [shape: f32[64,64], index: 3, kind: input, shape index: {}]
  %s4 = inlined_call_operand.vmem [shape: f32[64,1], index: 4, kind: input, shape index: {}]
  %s5 = inlined_call_operand.vmem [shape: f32[4,64], index: 5, kind: input, shape index: {}]
  %s6 = inlined_call_operand.vmem [shape: f32[4,1], index: 6, kind: input, shape index: {}]
  %s7 = inlined_call_operand.hbm [shape: f32[4,128], index: 7, kind: output, shape index: {}]
  %s8 = sld [smem:[#allocation0]]
  $region38: #{tpu_custom_call.1} parent=0
    _
  %s10 = ssub.s32 1, %s8
  %s11 = scalar_select 0, %s10, %s8
  $region1: #{tpu_custom_call.1} parent=0
    #allocation2 [shape = 'u8[2048]{0}', space=vmem, size = 0x800, scoped, tag = 'output window, operand 0, single buffered']
    #allocation3 [shape = 's32[1]{0}', space=sflag, size = 0x4, scoped, tag = 'scoped memory for tpu_custom_call.1']
    %12 = vsyncpa [#allocation3], 0
    // Predicated region
    $region2: #{tpu_custom_call.1} parent=1 // pred_check
      _
    $region3: #{tpu_custom_call.1} parent=1 // pred_check_branch
      %14 = sbr.rel (0) target = $region5
    $region4: #{tpu_custom_call.1} parent=1 // pred_region
      _
    $region5: #{tpu_custom_call.1} parent=1 // pred_fallthru
      _
    // Predicated region
    $region6: #{tpu_custom_call.1} parent=1 // pred_check
      _
    $region7: #{tpu_custom_call.1} parent=1 // pred_check_branch
      %16 = sbr.rel (0) target = $region9
    $region8: #{tpu_custom_call.1} parent=1 // pred_region
      _
    $region9: #{tpu_custom_call.1} parent=1 // pred_fallthru
      _
    // Predicated region
    $region10: #{tpu_custom_call.1} parent=1 // pred_check
      _
    $region11: #{tpu_custom_call.1} parent=1 // pred_check_branch
      %18 = sbr.rel (0) target = $region13
    $region12: #{tpu_custom_call.1} parent=1 // pred_region
      _
    $region13: #{tpu_custom_call.1} parent=1 // pred_fallthru
      _
    // Predicated region
    $region14: #{tpu_custom_call.1} parent=1 // pred_check
      _
    $region15: #{tpu_custom_call.1} parent=1 // pred_check_branch
      %20 = sbr.rel (0) target = $region17
    $region16: #{tpu_custom_call.1} parent=1 // pred_region
      _
    $region17: #{tpu_custom_call.1} parent=1 // pred_fallthru
      _
    // Predicated region
    $region18: #{tpu_custom_call.1} parent=1 // pred_check
      _
    $region19: #{tpu_custom_call.1} parent=1 // pred_check_branch
      %22 = sbr.rel (0) target = $region21
    $region20: #{tpu_custom_call.1} parent=1 // pred_region
      _
    $region21: #{tpu_custom_call.1} parent=1 // pred_fallthru
      _
    // Predicated region
    $region22: #{tpu_custom_call.1} parent=1 // pred_check
      _
    $region23: #{tpu_custom_call.1} parent=1 // pred_check_branch
      %24 = sbr.rel (0) target = $region25
    $region24: #{tpu_custom_call.1} parent=1 // pred_region
      _
    $region25: #{tpu_custom_call.1} parent=1 // pred_fallthru
      _
    // Predicated region
    $region26: #{tpu_custom_call.1} parent=1 // pred_check
      _
    $region27: #{tpu_custom_call.1} parent=1 // pred_check_branch
      %26 = sbr.rel (0) target = $region29
    $region28: #{tpu_custom_call.1} parent=1 // pred_region
      _
    $region29: #{tpu_custom_call.1} parent=1 // pred_fallthru
      _
    %v27 = vld [vmem:[%s1] sm:$0xff]
    %v28 = vld [vmem:[%s1 + $0x8] sm:$0xff]
    %v29 = vld [vmem:[%s1 + $0x10] sm:$0xff]
    %v30 = vld [vmem:[%s1 + $0x18] sm:$0xff]
    %v31 = vld [vmem:[%s1 + $0x20] sm:$0xff]
    %v32 = vld [vmem:[%s1 + $0x28] sm:$0xff]
    %v33 = vld [vmem:[%s1 + $0x30] sm:$0xff]
    %v34 = vld [vmem:[%s1 + $0x38] sm:$0xff]
    %v35 = vld [vmem:[%s0] sm:$0xff]
    %v36 = vld [vmem:[%s2] sm:$0xff]
    %v37 = vld [vmem:[%s2 + $0x8] sm:$0xff]
    %v38 = vld [vmem:[%s2 + $0x10] sm:$0xff]
    %v39 = vld [vmem:[%s2 + $0x18] sm:$0xff]
    %v40 = vld [vmem:[%s2 + $0x20] sm:$0xff]
    %v41 = vld [vmem:[%s2 + $0x28] sm:$0xff]
    %v42 = vld [vmem:[%s2 + $0x30] sm:$0xff]
    %v43 = vld [vmem:[%s2 + $0x38] sm:$0xff]
    %45 = vset.pattern.permute.xlu0 0
    %46 = vperm.xlu0 %45, %v36
    %v47 = vpop.permute.xlu0 %46
    %50 = vset.pattern.permute.xlu0 0
    %51 = vperm.xlu0 %50, %v37
    %v52 = vpop.permute.xlu0 %51
    %55 = vset.pattern.permute.xlu0 0
    %56 = vperm.xlu0 %55, %v38
    %v57 = vpop.permute.xlu0 %56
    %60 = vset.pattern.permute.xlu0 0
    %61 = vperm.xlu0 %60, %v39
    %v62 = vpop.permute.xlu0 %61
    %65 = vset.pattern.permute.xlu0 0
    %66 = vperm.xlu0 %65, %v40
    %v67 = vpop.permute.xlu0 %66
    %70 = vset.pattern.permute.xlu0 0
    %71 = vperm.xlu0 %70, %v41
    %v72 = vpop.permute.xlu0 %71
    %75 = vset.pattern.permute.xlu0 0
    %76 = vperm.xlu0 %75, %v42
    %v77 = vpop.permute.xlu0 %76
    %80 = vset.pattern.permute.xlu0 0
    %81 = vperm.xlu0 %80, %v43
    %v82 = vpop.permute.xlu0 %81
    %vm84 = vcmask 64512
    %v86 = vsel %vm84, %v27, 0
    %v89 = vsel %vm84, %v28, 0
    %v92 = vsel %vm84, %v29, 0
    %v95 = vsel %vm84, %v30, 0
    %v98 = vsel %vm84, %v31, 0
    %v101 = vsel %vm84, %v32, 0
    %v104 = vsel %vm84, %v33, 0
    %v107 = vsel %vm84, %v34, 0
    %109 = vmatprep.subr.mxu0 0.0
    %v110 = vand.u32 %v35, 4294901760
    %111 = vmatpush1.msra.mxu0 %v110
    %112 = vmatprep.subr.mxu0 0.0
    %113 = vmatpush1.msra.mxu0 0.0
    %114 = vmatprep.subr.mxu0 0.0
    %115 = vmatpush1.msra.mxu0 0.0
    %116 = vmatprep.subr.mxu0 0.0
    %117 = vmatpush1.msra.mxu0 0.0
    %118 = vmatprep.subr.mxu0 0.0
    %119 = vmatpush1.msra.mxu0 0.0
    %120 = vmatprep.subr.mxu0 0.0
    %121 = vmatpush1.msra.mxu0 0.0
    %122 = vmatprep.subr.mxu0 0.0
    %123 = vmatpush1.msra.mxu0 0.0
    %124 = vmatprep.subr.mxu0 0.0
    %125 = vmatpush1.msra.mxu0 0.0
    %126 = vmatprep.subr.mxu0 0.0
    %127 = vmatpush1.msra.mxu0 0.0
    %128 = vmatprep.subr.mxu0 0.0
    %129 = vmatpush1.msra.mxu0 0.0
    %130 = vmatprep.subr.mxu0 0.0
    %131 = vmatpush1.msra.mxu0 0.0
    %132 = vmatprep.subr.mxu0 0.0
    %133 = vmatpush1.msra.mxu0 0.0
    %134 = vmatprep.subr.mxu0 0.0
    %135 = vmatpush1.msra.mxu0 0.0
    %136 = vmatprep.subr.mxu0 0.0
    %137 = vmatpush1.msra.mxu0 0.0
    %138 = vmatprep.subr.mxu0 0.0
    %139 = vmatpush1.msra.mxu0 0.0
    %140 = vmatprep.subr.mxu0 0.0
    %141 = vmatpush1.msra.mxu0 0.0
    %142 = vmatprep.subr.mxu0 0.0
    %143 = vmatpush1.msra.mxu0 0.0
    %144 = vmatprep.subr.mxu0 0.0
    %145 = vmatpush1.msra.mxu0 0.0
    %146 = vmatprep.subr.mxu0 0.0
    %147 = vmatpush1.msra.mxu0 0.0
    %148 = vmatprep.subr.mxu0 0.0
    %149 = vmatpush1.msra.mxu0 0.0
    %150 = vmatprep.subr.mxu0 0.0
    %151 = vmatpush1.msra.mxu0 0.0
    %152 = vmatprep.subr.mxu0 0.0
    %153 = vmatpush1.msra.mxu0 0.0
    %154 = vmatprep.subr.mxu0 0.0
    %155 = vmatpush1.msra.mxu0 0.0
    %156 = vmatprep.subr.mxu0 0.0
    %157 = vmatpush1.msra.mxu0 0.0
    %158 = vmatprep.subr.mxu0 0.0
    %159 = vmatpush1.msra.mxu0 0.0
    %160 = vmatprep.subr.mxu0 0.0
    %161 = vmatpush1.msra.mxu0 0.0
    %162 = vmatprep.subr.mxu0 0.0
    %163 = vmatpush1.msra.mxu0 0.0
    %164 = vmatprep.subr.mxu0 0.0
    %165 = vmatpush1.msra.mxu0 0.0
    %166 = vmatprep.subr.mxu0 0.0
    %167 = vmatpush1.msra.mxu0 0.0
    %168 = vmatprep.subr.mxu0 0.0
    %169 = vmatpush1.msra.mxu0 0.0
    %170 = vmatprep.subr.mxu0 0.0
    %171 = vmatpush1.msra.mxu0 0.0
    %172 = vmatprep.subr.mxu0 0.0
    %173 = vmatpush1.msra.mxu0 0.0
    %174 = vmatprep.mubr.f32.mxu0 0.0
    %v175 = vand.u32 %v86, 4294901760
    %v176 = vsub.f32 %v86, %v175
    %v177 = vand.u32 %v176, 4294901760
    %v178 = vsub.f32 %v176, %v177
    %v179 = vand.u32 %v178, 4294901760
    %180 = vmatmul.mubr.f32.gmra.mrb[0].mxu0 %v179
    %v181 = vpop.f32.mrb[0].mxu0
    %v182 = vadd.f32 %v47, %v181
    %v183 = vpop.f32.mrb[0].mxu0
    %184 = vmatprep.mubr.f32.mxu0 0.0
    %v185 = vand.u32 %v89, 4294901760
    %v186 = vsub.f32 %v89, %v185
    %v187 = vand.u32 %v186, 4294901760
    %v188 = vsub.f32 %v186, %v187
    %v189 = vand.u32 %v188, 4294901760
    %190 = vmatmul.mubr.f32.gmra.mrb[0].mxu0 %v189
    %v191 = vpop.f32.mrb[0].mxu0
    %v192 = vadd.f32 %v52, %v191
    %v193 = vpop.f32.mrb[0].mxu0
    %194 = vmatprep.mubr.f32.mxu0 0.0
    %v195 = vand.u32 %v92, 4294901760
    %v196 = vsub.f32 %v92, %v195
    %v197 = vand.u32 %v196, 4294901760
    %v198 = vsub.f32 %v196, %v197
    %v199 = vand.u32 %v198, 4294901760
    %200 = vmatmul.mubr.f32.gmra.mrb[0].mxu0 %v199
    %v201 = vpop.f32.mrb[0].mxu0
    %v202 = vadd.f32 %v57, %v201
    %v203 = vpop.f32.mrb[0].mxu0
    %204 = vmatprep.mubr.f32.mxu0 0.0
    %v205 = vand.u32 %v95, 4294901760
    %v206 = vsub.f32 %v95, %v205
    %v207 = vand.u32 %v206, 4294901760
    %v208 = vsub.f32 %v206, %v207
    %v209 = vand.u32 %v208, 4294901760
    %210 = vmatmul.mubr.f32.gmra.mrb[0].mxu0 %v209
    %v211 = vpop.f32.mrb[0].mxu0
    %v212 = vadd.f32 %v62, %v211
    %v213 = vpop.f32.mrb[0].mxu0
    %214 = vmatprep.mubr.f32.mxu0 0.0
    %v215 = vand.u32 %v98, 4294901760
    %v216 = vsub.f32 %v98, %v215
    %v217 = vand.u32 %v216, 4294901760
    %v218 = vsub.f32 %v216, %v217
    %v219 = vand.u32 %v218, 4294901760
    %220 = vmatmul.mubr.f32.gmra.mrb[0].mxu0 %v219
    %v221 = vpop.f32.mrb[0].mxu0
    %v222 = vadd.f32 %v67, %v221
    %v223 = vpop.f32.mrb[0].mxu0
    %224 = vmatprep.mubr.f32.mxu0 0.0
    %v225 = vand.u32 %v101, 4294901760
    %v226 = vsub.f32 %v101, %v225
    %v227 = vand.u32 %v226, 4294901760
    %v228 = vsub.f32 %v226, %v227
    %v229 = vand.u32 %v228, 4294901760
    %230 = vmatmul.mubr.f32.gmra.mrb[0].mxu0 %v229
    %v231 = vpop.f32.mrb[0].mxu0
    %v232 = vadd.f32 %v72, %v231
    %v233 = vpop.f32.mrb[0].mxu0
    %234 = vmatprep.mubr.f32.mxu0 0.0
    %v235 = vand.u32 %v104, 4294901760
    %v236 = vsub.f32 %v104, %v235
    %v237 = vand.u32 %v236, 4294901760
    %v238 = vsub.f32 %v236, %v237
    %v239 = vand.u32 %v238, 4294901760
    %240 = vmatmul.mubr.f32.gmra.mrb[0].mxu0 %v239
    %v241 = vpop.f32.mrb[0].mxu0
    %v242 = vadd.f32 %v77, %v241
    %v243 = vpop.f32.mrb[0].mxu0
    %244 = vmatprep.mubr.f32.mxu0 0.0
    %v245 = vand.u32 %v107, 4294901760
    %v246 = vsub.f32 %v107, %v245
    %v247 = vand.u32 %v246, 4294901760
    %v248 = vsub.f32 %v246, %v247
    %v249 = vand.u32 %v248, 4294901760
    %250 = vmatmul.mubr.f32.gmra.mrb[0].mxu0 %v249
    %v251 = vpop.f32.mrb[0].mxu0
    %v252 = vadd.f32 %v82, %v251
    %v253 = vpop.f32.mrb[0].mxu0
    %254 = vdwg.mxu0
    %255 = vmatprep.subr.mxu0 0.0
    %v256 = vand.u32 %v35, 4294901760
    %v257 = vsub.f32 %v35, %v256
    %v258 = vand.u32 %v257, 4294901760
    %v259 = vsub.f32 %v257, %v258
    %v260 = vand.u32 %v259, 4294901760
    %261 = vmatpush1.msra.mxu0 %v260
    %262 = vmatprep.subr.mxu0 0.0
    %263 = vmatpush1.msra.mxu0 0.0
    %264 = vmatprep.subr.mxu0 0.0
    %265 = vmatpush1.msra.mxu0 0.0
    %266 = vmatprep.subr.mxu0 0.0
    %267 = vmatpush1.msra.mxu0 0.0
    %268 = vmatprep.subr.mxu0 0.0
    %269 = vmatpush1.msra.mxu0 0.0
    %270 = vmatprep.subr.mxu0 0.0
    %271 = vmatpush1.msra.mxu0 0.0
    %272 = vmatprep.subr.mxu0 0.0
    %273 = vmatpush1.msra.mxu0 0.0
    %274 = vmatprep.subr.mxu0 0.0
    %275 = vmatpush1.msra.mxu0 0.0
    %276 = vmatprep.subr.mxu0 0.0
    %277 = vmatpush1.msra.mxu0 0.0
    %278 = vmatprep.subr.mxu0 0.0
    %279 = vmatpush1.msra.mxu0 0.0
    %280 = vmatprep.subr.mxu0 0.0
    %281 = vmatpush1.msra.mxu0 0.0
    %282 = vmatprep.subr.mxu0 0.0
    %283 = vmatpush1.msra.mxu0 0.0
    %284 = vmatprep.subr.mxu0 0.0
    %285 = vmatpush1.msra.mxu0 0.0
    %286 = vmatprep.subr.mxu0 0.0
    %287 = vmatpush1.msra.mxu0 0.0
    %288 = vmatprep.subr.mxu0 0.0
    %289 = vmatpush1.msra.mxu0 0.0
    %290 = vmatprep.subr.mxu0 0.0
    %291 = vmatpush1.msra.mxu0 0.0
    %292 = vmatprep.subr.mxu0 0.0
    %293 = vmatpush1.msra.mxu0 0.0
    %294 = vmatprep.subr.mxu0 0.0
    %295 = vmatpush1.msra.mxu0 0.0
    %296 = vmatprep.subr.mxu0 0.0
    %297 = vmatpush1.msra.mxu0 0.0
    %298 = vmatprep.subr.mxu0 0.0
    %299 = vmatpush1.msra.mxu0 0.0
    %300 = vmatprep.subr.mxu0 0.0
    %301 = vmatpush1.msra.mxu0 0.0
    %302 = vmatprep.subr.mxu0 0.0
    %303 = vmatpush1.msra.mxu0 0.0
    %304 = vmatprep.subr.mxu0 0.0
    %305 = vmatpush1.msra.mxu0 0.0
    %306 = vmatprep.subr.mxu0 0.0
    %307 = vmatpush1.msra.mxu0 0.0
    %308 = vmatprep.subr.mxu0 0.0
    %309 = vmatpush1.msra.mxu0 0.0
    %310 = vmatprep.subr.mxu0 0.0
    %311 = vmatpush1.msra.mxu0 0.0
    %312 = vmatprep.subr.mxu0 0.0
    %313 = vmatpush1.msra.mxu0 0.0
    %314 = vmatprep.subr.mxu0 0.0
    %315 = vmatpush1.msra.mxu0 0.0
    %316 = vmatprep.subr.mxu0 0.0
    %317 = vmatpush1.msra.mxu0 0.0
    %318 = vmatprep.subr.mxu0 0.0
    %319 = vmatpush1.msra.mxu0 0.0
    %320 = vmatprep.subr.mxu0 0.0
    %321 = vmatpush1.msra.mxu0 0.0
    %322 = vmatprep.subr.mxu0 0.0
    %323 = vmatpush1.msra.mxu0 0.0
    %324 = vmatprep.mubr.f32.mxu0 0.0
    %v325 = vand.u32 %v86, 4294901760
    %326 = vmatmul.mubr.f32.gmra.mrb[0].mxu0 %v325
    %v327 = vpop.f32.mrb[0].mxu0
    %v328 = vadd.f32 %v182, %v327
    %v329 = vpop.f32.mrb[0].mxu0
    %330 = vmatprep.mubr.f32.mxu0 0.0
    %v331 = vand.u32 %v89, 4294901760
    %332 = vmatmul.mubr.f32.gmra.mrb[0].mxu0 %v331
    %v333 = vpop.f32.mrb[0].mxu0
    %v334 = vadd.f32 %v192, %v333
    %v335 = vpop.f32.mrb[0].mxu0
    %336 = vmatprep.mubr.f32.mxu0 0.0
    %v337 = vand.u32 %v92, 4294901760
    %338 = vmatmul.mubr.f32.gmra.mrb[0].mxu0 %v337
    %v339 = vpop.f32.mrb[0].mxu0
    %v340 = vadd.f32 %v202, %v339
    %v341 = vpop.f32.mrb[0].mxu0
    %342 = vmatprep.mubr.f32.mxu0 0.0
    %v343 = vand.u32 %v95, 4294901760
    %344 = vmatmul.mubr.f32.gmra.mrb[0].mxu0 %v343
    %v345 = vpop.f32.mrb[0].mxu0
    %v346 = vadd.f32 %v212, %v345
    %v347 = vpop.f32.mrb[0].mxu0
    %348 = vmatprep.mubr.f32.mxu0 0.0
    %v349 = vand.u32 %v98, 4294901760
    %350 = vmatmul.mubr.f32.gmra.mrb[0].mxu0 %v349
    %v351 = vpop.f32.mrb[0].mxu0
    %v352 = vadd.f32 %v222, %v351
    %v353 = vpop.f32.mrb[0].mxu0
    %354 = vmatprep.mubr.f32.mxu0 0.0
    %v355 = vand.u32 %v101, 4294901760
    %356 = vmatmul.mubr.f32.gmra.mrb[0].mxu0 %v355
    %v357 = vpop.f32.mrb[0].mxu0
    %v358 = vadd.f32 %v232, %v357
    %v359 = vpop.f32.mrb[0].mxu0
    %360 = vmatprep.mubr.f32.mxu0 0.0
    %v361 = vand.u32 %v104, 4294901760
    %362 = vmatmul.mubr.f32.gmra.mrb[0].mxu0 %v361
    %v363 = vpop.f32.mrb[0].mxu0
    %v364 = vadd.f32 %v242, %v363
    %v365 = vpop.f32.mrb[0].mxu0
    %366 = vmatprep.mubr.f32.mxu0 0.0
    %v367 = vand.u32 %v107, 4294901760
    %368 = vmatmul.mubr.f32.gmra.mrb[0].mxu0 %v367
    %v369 = vpop.f32.mrb[0].mxu0
    %v370 = vadd.f32 %v252, %v369
    %v371 = vpop.f32.mrb[0].mxu0
    %372 = vdwg.mxu0
    %373 = vmatprep.subr.mxu0 0.0
    %v374 = vand.u32 %v35, 4294901760
    %v375 = vsub.f32 %v35, %v374
    %376 = vmatpush1.msra.mxu0 %v375
    %377 = vmatprep.subr.mxu0 0.0
    %378 = vmatpush1.msra.mxu0 0.0
    %379 = vmatprep.subr.mxu0 0.0
    %380 = vmatpush1.msra.mxu0 0.0
    %381 = vmatprep.subr.mxu0 0.0
    %382 = vmatpush1.msra.mxu0 0.0
    %383 = vmatprep.subr.mxu0 0.0
    %384 = vmatpush1.msra.mxu0 0.0
    %385 = vmatprep.subr.mxu0 0.0
    %386 = vmatpush1.msra.mxu0 0.0
    %387 = vmatprep.subr.mxu0 0.0
    %388 = vmatpush1.msra.mxu0 0.0
    %389 = vmatprep.subr.mxu0 0.0
    %390 = vmatpush1.msra.mxu0 0.0
    %391 = vmatprep.subr.mxu0 0.0
    %392 = vmatpush1.msra.mxu0 0.0
    %393 = vmatprep.subr.mxu0 0.0
    %394 = vmatpush1.msra.mxu0 0.0
    %395 = vmatprep.subr.mxu0 0.0
    %396 = vmatpush1.msra.mxu0 0.0
    %397 = vmatprep.subr.mxu0 0.0
    %398 = vmatpush1.msra.mxu0 0.0
    %399 = vmatprep.subr.mxu0 0.0
    %400 = vmatpush1.msra.mxu0 0.0
    %401 = vmatprep.subr.mxu0 0.0
    %402 = vmatpush1.msra.mxu0 0.0
    %403 = vmatprep.subr.mxu0 0.0
    %404 = vmatpush1.msra.mxu0 0.0
    %405 = vmatprep.subr.mxu0 0.0
    %406 = vmatpush1.msra.mxu0 0.0
    %407 = vmatprep.subr.mxu0 0.0
    %408 = vmatpush1.msra.mxu0 0.0
    %409 = vmatprep.subr.mxu0 0.0
    %410 = vmatpush1.msra.mxu0 0.0
    %411 = vmatprep.subr.mxu0 0.0
    %412 = vmatpush1.msra.mxu0 0.0
    %413 = vmatprep.subr.mxu0 0.0
    %414 = vmatpush1.msra.mxu0 0.0
    %415 = vmatprep.subr.mxu0 0.0
    %416 = vmatpush1.msra.mxu0 0.0
    %417 = vmatprep.subr.mxu0 0.0
    %418 = vmatpush1.msra.mxu0 0.0
    %419 = vmatprep.subr.mxu0 0.0
    %420 = vmatpush1.msra.mxu0 0.0
    %421 = vmatprep.subr.mxu0 0.0
    %422 = vmatpush1.msra.mxu0 0.0
    %423 = vmatprep.subr.mxu0 0.0
    %424 = vmatpush1.msra.mxu0 0.0
    %425 = vmatprep.subr.mxu0 0.0
    %426 = vmatpush1.msra.mxu0 0.0
    %427 = vmatprep.subr.mxu0 0.0
    %428 = vmatpush1.msra.mxu0 0.0
    %429 = vmatprep.subr.mxu0 0.0
    %430 = vmatpush1.msra.mxu0 0.0
    %431 = vmatprep.subr.mxu0 0.0
    %432 = vmatpush1.msra.mxu0 0.0
    %433 = vmatprep.subr.mxu0 0.0
    %434 = vmatpush1.msra.mxu0 0.0
    %435 = vmatprep.subr.mxu0 0.0
    %436 = vmatpush1.msra.mxu0 0.0
    %437 = vmatprep.subr.mxu0 0.0
    %438 = vmatpush1.msra.mxu0 0.0
    %439 = vmatprep.mubr.f32.mxu0 0.0
    %v440 = vand.u32 %v86, 4294901760
    %v441 = vsub.f32 %v86, %v440
    %442 = vmatmul.mubr.f32.gmra.mrb[0].mxu0 %v441
    %v443 = vpop.f32.mrb[0].mxu0
    %v444 = vadd.f32 %v328, %v443
    %v445 = vpop.f32.mrb[0].mxu0
    %446 = vmatprep.mubr.f32.mxu0 0.0
    %v447 = vand.u32 %v89, 4294901760
    %v448 = vsub.f32 %v89, %v447
    %449 = vmatmul.mubr.f32.gmra.mrb[0].mxu0 %v448
    %v450 = vpop.f32.mrb[0].mxu0
    %v451 = vadd.f32 %v334, %v450
    %v452 = vpop.f32.mrb[0].mxu0
    %453 = vmatprep.mubr.f32.mxu0 0.0
    %v454 = vand.u32 %v92, 4294901760
    %v455 = vsub.f32 %v92, %v454
    %456 = vmatmul.mubr.f32.gmra.mrb[0].mxu0 %v455
    %v457 = vpop.f32.mrb[0].mxu0
    %v458 = vadd.f32 %v340, %v457
    %v459 = vpop.f32.mrb[0].mxu0
    %460 = vmatprep.mubr.f32.mxu0 0.0
    %v461 = vand.u32 %v95, 4294901760
    %v462 = vsub.f32 %v95, %v461
    %463 = vmatmul.mubr.f32.gmra.mrb[0].mxu0 %v462
    %v464 = vpop.f32.mrb[0].mxu0
    %v465 = vadd.f32 %v346, %v464
    %v466 = vpop.f32.mrb[0].mxu0
    %467 = vmatprep.mubr.f32.mxu0 0.0
    %v468 = vand.u32 %v98, 4294901760
    %v469 = vsub.f32 %v98, %v468
    %470 = vmatmul.mubr.f32.gmra.mrb[0].mxu0 %v469
    %v471 = vpop.f32.mrb[0].mxu0
    %v472 = vadd.f32 %v352, %v471
    %v473 = vpop.f32.mrb[0].mxu0
    %474 = vmatprep.mubr.f32.mxu0 0.0
    %v475 = vand.u32 %v101, 4294901760
    %v476 = vsub.f32 %v101, %v475
    %477 = vmatmul.mubr.f32.gmra.mrb[0].mxu0 %v476
    %v478 = vpop.f32.mrb[0].mxu0
    %v479 = vadd.f32 %v358, %v478
    %v480 = vpop.f32.mrb[0].mxu0
    %481 = vmatprep.mubr.f32.mxu0 0.0
    %v482 = vand.u32 %v104, 4294901760
    %v483 = vsub.f32 %v104, %v482
    %484 = vmatmul.mubr.f32.gmra.mrb[0].mxu0 %v483
    %v485 = vpop.f32.mrb[0].mxu0
    %v486 = vadd.f32 %v364, %v485
    %v487 = vpop.f32.mrb[0].mxu0
    %488 = vmatprep.mubr.f32.mxu0 0.0
    %v489 = vand.u32 %v107, 4294901760
    %v490 = vsub.f32 %v107, %v489
    %491 = vmatmul.mubr.f32.gmra.mrb[0].mxu0 %v490
    %v492 = vpop.f32.mrb[0].mxu0
    %v493 = vadd.f32 %v370, %v492
    %v494 = vpop.f32.mrb[0].mxu0
    %495 = vdwg.mxu0
    %496 = vmatprep.subr.mxu0 0.0
    %v497 = vand.u32 %v35, 4294901760
    %498 = vmatpush1.msra.mxu0 %v497
    %499 = vmatprep.subr.mxu0 0.0
    %500 = vmatpush1.msra.mxu0 0.0
    %501 = vmatprep.subr.mxu0 0.0
    %502 = vmatpush1.msra.mxu0 0.0
    %503 = vmatprep.subr.mxu0 0.0
    %504 = vmatpush1.msra.mxu0 0.0
    %505 = vmatprep.subr.mxu0 0.0
    %506 = vmatpush1.msra.mxu0 0.0
    %507 = vmatprep.subr.mxu0 0.0
    %508 = vmatpush1.msra.mxu0 0.0
    %509 = vmatprep.subr.mxu0 0.0
    %510 = vmatpush1.msra.mxu0 0.0
    %511 = vmatprep.subr.mxu0 0.0
    %512 = vmatpush1.msra.mxu0 0.0
    %513 = vmatprep.subr.mxu0 0.0
    %514 = vmatpush1.msra.mxu0 0.0
    %515 = vmatprep.subr.mxu0 0.0
    %516 = vmatpush1.msra.mxu0 0.0
    %517 = vmatprep.subr.mxu0 0.0
    %518 = vmatpush1.msra.mxu0 0.0
    %519 = vmatprep.subr.mxu0 0.0
    %520 = vmatpush1.msra.mxu0 0.0
    %521 = vmatprep.subr.mxu0 0.0
    %522 = vmatpush1.msra.mxu0 0.0
    %523 = vmatprep.subr.mxu0 0.0
    %524 = vmatpush1.msra.mxu0 0.0
    %525 = vmatprep.subr.mxu0 0.0
    %526 = vmatpush1.msra.mxu0 0.0
    %527 = vmatprep.subr.mxu0 0.0
    %528 = vmatpush1.msra.mxu0 0.0
    %529 = vmatprep.subr.mxu0 0.0
    %530 = vmatpush1.msra.mxu0 0.0
    %531 = vmatprep.subr.mxu0 0.0
    %532 = vmatpush1.msra.mxu0 0.0
    %533 = vmatprep.subr.mxu0 0.0
    %534 = vmatpush1.msra.mxu0 0.0
    %535 = vmatprep.subr.mxu0 0.0
    %536 = vmatpush1.msra.mxu0 0.0
    %537 = vmatprep.subr.mxu0 0.0
    %538 = vmatpush1.msra.mxu0 0.0
    %539 = vmatprep.subr.mxu0 0.0
    %540 = vmatpush1.msra.mxu0 0.0
    %541 = vmatprep.subr.mxu0 0.0
    %542 = vmatpush1.msra.mxu0 0.0
    %543 = vmatprep.subr.mxu0 0.0
    %544 = vmatpush1.msra.mxu0 0.0
    %545 = vmatprep.subr.mxu0 0.0
    %546 = vmatpush1.msra.mxu0 0.0
    %547 = vmatprep.subr.mxu0 0.0
    %548 = vmatpush1.msra.mxu0 0.0
    %549 = vmatprep.subr.mxu0 0.0
    %550 = vmatpush1.msra.mxu0 0.0
    %551 = vmatprep.subr.mxu0 0.0
    %552 = vmatpush1.msra.mxu0 0.0
    %553 = vmatprep.subr.mxu0 0.0
    %554 = vmatpush1.msra.mxu0 0.0
    %555 = vmatprep.subr.mxu0 0.0
    %556 = vmatpush1.msra.mxu0 0.0
    %557 = vmatprep.subr.mxu0 0.0
    %558 = vmatpush1.msra.mxu0 0.0
    %559 = vmatprep.subr.mxu0 0.0
    %560 = vmatpush1.msra.mxu0 0.0
    %561 = vmatprep.mubr.f32.mxu0 0.0
    %v562 = vand.u32 %v86, 4294901760
    %v563 = vsub.f32 %v86, %v562
    %v564 = vand.u32 %v563, 4294901760
    %565 = vmatmul.mubr.f32.gmra.mrb[0].mxu0 %v564
    %v566 = vpop.f32.mrb[0].mxu0
    %v567 = vadd.f32 %v444, %v566
    %v568 = vpop.f32.mrb[0].mxu0
    %569 = vmatprep.mubr.f32.mxu0 0.0
    %v570 = vand.u32 %v89, 4294901760
    %v571 = vsub.f32 %v89, %v570
    %v572 = vand.u32 %v571, 4294901760
    %573 = vmatmul.mubr.f32.gmra.mrb[0].mxu0 %v572
    %v574 = vpop.f32.mrb[0].mxu0
    %v575 = vadd.f32 %v451, %v574
    %v576 = vpop.f32.mrb[0].mxu0
    %577 = vmatprep.mubr.f32.mxu0 0.0
    %v578 = vand.u32 %v92, 4294901760
    %v579 = vsub.f32 %v92, %v578
    %v580 = vand.u32 %v579, 4294901760
    %581 = vmatmul.mubr.f32.gmra.mrb[0].mxu0 %v580
    %v582 = vpop.f32.mrb[0].mxu0
    %v583 = vadd.f32 %v458, %v582
    %v584 = vpop.f32.mrb[0].mxu0
    %585 = vmatprep.mubr.f32.mxu0 0.0
    %v586 = vand.u32 %v95, 4294901760
    %v587 = vsub.f32 %v95, %v586
    %v588 = vand.u32 %v587, 4294901760
    %589 = vmatmul.mubr.f32.gmra.mrb[0].mxu0 %v588
    %v590 = vpop.f32.mrb[0].mxu0
    %v591 = vadd.f32 %v465, %v590
    %v592 = vpop.f32.mrb[0].mxu0
    %593 = vmatprep.mubr.f32.mxu0 0.0
    %v594 = vand.u32 %v98, 4294901760
    %v595 = vsub.f32 %v98, %v594
    %v596 = vand.u32 %v595, 4294901760
    %597 = vmatmul.mubr.f32.gmra.mrb[0].mxu0 %v596
    %v598 = vpop.f32.mrb[0].mxu0
    %v599 = vadd.f32 %v472, %v598
    %v600 = vpop.f32.mrb[0].mxu0
    %601 = vmatprep.mubr.f32.mxu0 0.0
    %v602 = vand.u32 %v101, 4294901760
    %v603 = vsub.f32 %v101, %v602
    %v604 = vand.u32 %v603, 4294901760
    %605 = vmatmul.mubr.f32.gmra.mrb[0].mxu0 %v604
    %v606 = vpop.f32.mrb[0].mxu0
    %v607 = vadd.f32 %v479, %v606
    %v608 = vpop.f32.mrb[0].mxu0
    %609 = vmatprep.mubr.f32.mxu0 0.0
    %v610 = vand.u32 %v104, 4294901760
    %v611 = vsub.f32 %v104, %v610
    %v612 = vand.u32 %v611, 4294901760
    %613 = vmatmul.mubr.f32.gmra.mrb[0].mxu0 %v612
    %v614 = vpop.f32.mrb[0].mxu0
    %v615 = vadd.f32 %v486, %v614
    %v616 = vpop.f32.mrb[0].mxu0
    %617 = vmatprep.mubr.f32.mxu0 0.0
    %v618 = vand.u32 %v107, 4294901760
    %v619 = vsub.f32 %v107, %v618
    %v620 = vand.u32 %v619, 4294901760
    %621 = vmatmul.mubr.f32.gmra.mrb[0].mxu0 %v620
    %v622 = vpop.f32.mrb[0].mxu0
    %v623 = vadd.f32 %v493, %v622
    %v624 = vpop.f32.mrb[0].mxu0
    %625 = vdwg.mxu0
    %626 = vmatprep.subr.mxu0 0.0
    %v627 = vand.u32 %v35, 4294901760
    %v628 = vsub.f32 %v35, %v627
    %v629 = vand.u32 %v628, 4294901760
    %630 = vmatpush1.msra.mxu0 %v629
    %631 = vmatprep.subr.mxu0 0.0
    %632 = vmatpush1.msra.mxu0 0.0
    %633 = vmatprep.subr.mxu0 0.0
    %634 = vmatpush1.msra.mxu0 0.0
    %635 = vmatprep.subr.mxu0 0.0
    %636 = vmatpush1.msra.mxu0 0.0
    %637 = vmatprep.subr.mxu0 0.0
    %638 = vmatpush1.msra.mxu0 0.0
    %639 = vmatprep.subr.mxu0 0.0
    %640 = vmatpush1.msra.mxu0 0.0
    %641 = vmatprep.subr.mxu0 0.0
    %642 = vmatpush1.msra.mxu0 0.0
    %643 = vmatprep.subr.mxu0 0.0
    %644 = vmatpush1.msra.mxu0 0.0
    %645 = vmatprep.subr.mxu0 0.0
    %646 = vmatpush1.msra.mxu0 0.0
    %647 = vmatprep.subr.mxu0 0.0
    %648 = vmatpush1.msra.mxu0 0.0
    %649 = vmatprep.subr.mxu0 0.0
    %650 = vmatpush1.msra.mxu0 0.0
    %651 = vmatprep.subr.mxu0 0.0
    %652 = vmatpush1.msra.mxu0 0.0
    %653 = vmatprep.subr.mxu0 0.0
    %654 = vmatpush1.msra.mxu0 0.0
    %655 = vmatprep.subr.mxu0 0.0
    %656 = vmatpush1.msra.mxu0 0.0
    %657 = vmatprep.subr.mxu0 0.0
    %658 = vmatpush1.msra.mxu0 0.0
    %659 = vmatprep.subr.mxu0 0.0
    %660 = vmatpush1.msra.mxu0 0.0
    %661 = vmatprep.subr.mxu0 0.0
    %662 = vmatpush1.msra.mxu0 0.0
    %663 = vmatprep.subr.mxu0 0.0
    %664 = vmatpush1.msra.mxu0 0.0
    %665 = vmatprep.subr.mxu0 0.0
    %666 = vmatpush1.msra.mxu0 0.0
    %667 = vmatprep.subr.mxu0 0.0
    %668 = vmatpush1.msra.mxu0 0.0
    %669 = vmatprep.subr.mxu0 0.0
    %670 = vmatpush1.msra.mxu0 0.0
    %671 = vmatprep.subr.mxu0 0.0
    %672 = vmatpush1.msra.mxu0 0.0
    %673 = vmatprep.subr.mxu0 0.0
    %674 = vmatpush1.msra.mxu0 0.0
    %675 = vmatprep.subr.mxu0 0.0
    %676 = vmatpush1.msra.mxu0 0.0
    %677 = vmatprep.subr.mxu0 0.0
    %678 = vmatpush1.msra.mxu0 0.0
    %679 = vmatprep.subr.mxu0 0.0
    %680 = vmatpush1.msra.mxu0 0.0
    %681 = vmatprep.subr.mxu0 0.0
    %682 = vmatpush1.msra.mxu0 0.0
    %683 = vmatprep.subr.mxu0 0.0
    %684 = vmatpush1.msra.mxu0 0.0
    %685 = vmatprep.subr.mxu0 0.0
    %686 = vmatpush1.msra.mxu0 0.0
    %687 = vmatprep.subr.mxu0 0.0
    %688 = vmatpush1.msra.mxu0 0.0
    %689 = vmatprep.subr.mxu0 0.0
    %690 = vmatpush1.msra.mxu0 0.0
    %691 = vmatprep.subr.mxu0 0.0
    %692 = vmatpush1.msra.mxu0 0.0
    %693 = vmatprep.mubr.f32.mxu0 0.0
    %v694 = vand.u32 %v86, 4294901760
    %695 = vmatmul.mubr.f32.gmra.mrb[0].mxu0 %v694
    %v696 = vpop.f32.mrb[0].mxu0
    %v697 = vadd.f32 %v567, %v696
    %v698 = vpop.f32.mrb[0].mxu0
    %699 = vmatprep.mubr.f32.mxu0 0.0
    %v700 = vand.u32 %v89, 4294901760
    %701 = vmatmul.mubr.f32.gmra.mrb[0].mxu0 %v700
    %v702 = vpop.f32.mrb[0].mxu0
    %v703 = vadd.f32 %v575, %v702
    %v704 = vpop.f32.mrb[0].mxu0
    %705 = vmatprep.mubr.f32.mxu0 0.0
    %v706 = vand.u32 %v92, 4294901760
    %707 = vmatmul.mubr.f32.gmra.mrb[0].mxu0 %v706
    %v708 = vpop.f32.mrb[0].mxu0
    %v709 = vadd.f32 %v583, %v708
    %v710 = vpop.f32.mrb[0].mxu0
    %711 = vmatprep.mubr.f32.mxu0 0.0
    %v712 = vand.u32 %v95, 4294901760
    %713 = vmatmul.mubr.f32.gmra.mrb[0].mxu0 %v712
    %v714 = vpop.f32.mrb[0].mxu0
    %v715 = vadd.f32 %v591, %v714
    %v716 = vpop.f32.mrb[0].mxu0
    %717 = vmatprep.mubr.f32.mxu0 0.0
    %v718 = vand.u32 %v98, 4294901760
    %719 = vmatmul.mubr.f32.gmra.mrb[0].mxu0 %v718
    %v720 = vpop.f32.mrb[0].mxu0
    %v721 = vadd.f32 %v599, %v720
    %v722 = vpop.f32.mrb[0].mxu0
    %723 = vmatprep.mubr.f32.mxu0 0.0
    %v724 = vand.u32 %v101, 4294901760
    %725 = vmatmul.mubr.f32.gmra.mrb[0].mxu0 %v724
    %v726 = vpop.f32.mrb[0].mxu0
    %v727 = vadd.f32 %v607, %v726
    %v728 = vpop.f32.mrb[0].mxu0
    %729 = vmatprep.mubr.f32.mxu0 0.0
    %v730 = vand.u32 %v104, 4294901760
    %731 = vmatmul.mubr.f32.gmra.mrb[0].mxu0 %v730
    %v732 = vpop.f32.mrb[0].mxu0
    %v733 = vadd.f32 %v615, %v732
    %v734 = vpop.f32.mrb[0].mxu0
    %735 = vmatprep.mubr.f32.mxu0 0.0
    %v736 = vand.u32 %v107, 4294901760
    %737 = vmatmul.mubr.f32.gmra.mrb[0].mxu0 %v736
    %v738 = vpop.f32.mrb[0].mxu0
    %v739 = vadd.f32 %v623, %v738
    %v740 = vpop.f32.mrb[0].mxu0
    %741 = vdwg.mxu0
    %742 = vmatprep.subr.mxu0 0.0
    %v743 = vand.u32 %v35, 4294901760
    %744 = vmatpush1.msra.mxu0 %v743
    %745 = vmatprep.subr.mxu0 0.0
    %746 = vmatpush1.msra.mxu0 0.0
    %747 = vmatprep.subr.mxu0 0.0
    %748 = vmatpush1.msra.mxu0 0.0
    %749 = vmatprep.subr.mxu0 0.0
    %750 = vmatpush1.msra.mxu0 0.0
    %751 = vmatprep.subr.mxu0 0.0
    %752 = vmatpush1.msra.mxu0 0.0
    %753 = vmatprep.subr.mxu0 0.0
    %754 = vmatpush1.msra.mxu0 0.0
    %755 = vmatprep.subr.mxu0 0.0
    %756 = vmatpush1.msra.mxu0 0.0
    %757 = vmatprep.subr.mxu0 0.0
    %758 = vmatpush1.msra.mxu0 0.0
    %759 = vmatprep.subr.mxu0 0.0
    %760 = vmatpush1.msra.mxu0 0.0
    %761 = vmatprep.subr.mxu0 0.0
    %762 = vmatpush1.msra.mxu0 0.0
    %763 = vmatprep.subr.mxu0 0.0
    %764 = vmatpush1.msra.mxu0 0.0
    %765 = vmatprep.subr.mxu0 0.0
    %766 = vmatpush1.msra.mxu0 0.0
    %767 = vmatprep.subr.mxu0 0.0
    %768 = vmatpush1.msra.mxu0 0.0
    %769 = vmatprep.subr.mxu0 0.0
    %770 = vmatpush1.msra.mxu0 0.0
    %771 = vmatprep.subr.mxu0 0.0
    %772 = vmatpush1.msra.mxu0 0.0
    %773 = vmatprep.subr.mxu0 0.0
    %774 = vmatpush1.msra.mxu0 0.0
    %775 = vmatprep.subr.mxu0 0.0
    %776 = vmatpush1.msra.mxu0 0.0
    %777 = vmatprep.subr.mxu0 0.0
    %778 = vmatpush1.msra.mxu0 0.0
    %779 = vmatprep.subr.mxu0 0.0
    %780 = vmatpush1.msra.mxu0 0.0
    %781 = vmatprep.subr.mxu0 0.0
    %782 = vmatpush1.msra.mxu0 0.0
    %783 = vmatprep.subr.mxu0 0.0
    %784 = vmatpush1.msra.mxu0 0.0
    %785 = vmatprep.subr.mxu0 0.0
    %786 = vmatpush1.msra.mxu0 0.0
    %787 = vmatprep.subr.mxu0 0.0
    %788 = vmatpush1.msra.mxu0 0.0
    %789 = vmatprep.subr.mxu0 0.0
    %790 = vmatpush1.msra.mxu0 0.0
    %791 = vmatprep.subr.mxu0 0.0
    %792 = vmatpush1.msra.mxu0 0.0
    %793 = vmatprep.subr.mxu0 0.0
    %794 = vmatpush1.msra.mxu0 0.0
    %795 = vmatprep.subr.mxu0 0.0
    %796 = vmatpush1.msra.mxu0 0.0
    %797 = vmatprep.subr.mxu0 0.0
    %798 = vmatpush1.msra.mxu0 0.0
    %799 = vmatprep.subr.mxu0 0.0
    %800 = vmatpush1.msra.mxu0 0.0
    %801 = vmatprep.subr.mxu0 0.0
    %802 = vmatpush1.msra.mxu0 0.0
    %803 = vmatprep.subr.mxu0 0.0
    %804 = vmatpush1.msra.mxu0 0.0
    %805 = vmatprep.subr.mxu0 0.0
    %806 = vmatpush1.msra.mxu0 0.0
    %807 = vmatprep.mubr.f32.mxu0 0.0
    %v808 = vand.u32 %v86, 4294901760
    %809 = vmatmul.mubr.f32.gmra.mrb[0].mxu0 %v808
    %v810 = vpop.f32.mrb[0].mxu0
    %v811 = vadd.f32 %v697, %v810
    %v812 = vpop.f32.mrb[0].mxu0
    %813 = vmatprep.mubr.f32.mxu0 0.0
    %v814 = vand.u32 %v89, 4294901760
    %815 = vmatmul.mubr.f32.gmra.mrb[0].mxu0 %v814
    %v816 = vpop.f32.mrb[0].mxu0
    %v817 = vadd.f32 %v703, %v816
    %v818 = vpop.f32.mrb[0].mxu0
    %819 = vmatprep.mubr.f32.mxu0 0.0
    %v820 = vand.u32 %v92, 4294901760
    %821 = vmatmul.mubr.f32.gmra.mrb[0].mxu0 %v820
    %v822 = vpop.f32.mrb[0].mxu0
    %v823 = vadd.f32 %v709, %v822
    %v824 = vpop.f32.mrb[0].mxu0
    %825 = vmatprep.mubr.f32.mxu0 0.0
    %v826 = vand.u32 %v95, 4294901760
    %827 = vmatmul.mubr.f32.gmra.mrb[0].mxu0 %v826
    %v828 = vpop.f32.mrb[0].mxu0
    %v829 = vadd.f32 %v715, %v828
    %v830 = vpop.f32.mrb[0].mxu0
    %831 = vmatprep.mubr.f32.mxu0 0.0
    %v832 = vand.u32 %v98, 4294901760
    %833 = vmatmul.mubr.f32.gmra.mrb[0].mxu0 %v832
    %v834 = vpop.f32.mrb[0].mxu0
    %v835 = vadd.f32 %v721, %v834
    %v836 = vpop.f32.mrb[0].mxu0
    %837 = vmatprep.mubr.f32.mxu0 0.0
    %v838 = vand.u32 %v101, 4294901760
    %839 = vmatmul.mubr.f32.gmra.mrb[0].mxu0 %v838
    %v840 = vpop.f32.mrb[0].mxu0
    %v841 = vadd.f32 %v727, %v840
    %v842 = vpop.f32.mrb[0].mxu0
    %843 = vmatprep.mubr.f32.mxu0 0.0
    %v844 = vand.u32 %v104, 4294901760
    %845 = vmatmul.mubr.f32.gmra.mrb[0].mxu0 %v844
    %v846 = vpop.f32.mrb[0].mxu0
    %v847 = vadd.f32 %v733, %v846
    %v848 = vpop.f32.mrb[0].mxu0
    %849 = vmatprep.mubr.f32.mxu0 0.0
    %v850 = vand.u32 %v107, 4294901760
    %851 = vmatmul.mubr.f32.gmra.mrb[0].mxu0 %v850
    %v852 = vpop.f32.mrb[0].mxu0
    %v853 = vadd.f32 %v739, %v852
    %v854 = vpop.f32.mrb[0].mxu0
    %855 = vdwg.mxu0
    %v856 = vmax.f32 %v811, 0.0
    %v857 = vmax.f32 %v817, 0.0
    %v858 = vmax.f32 %v823, 0.0
    %v859 = vmax.f32 %v829, 0.0
    %v860 = vmax.f32 %v835, 0.0
    %v861 = vmax.f32 %v841, 0.0
    %v862 = vmax.f32 %v847, 0.0
    %v863 = vmax.f32 %v853, 0.0
    %v864 = vld [vmem:[%s3] sm:$0xff]
    %v865 = vld [vmem:[%s3 + $0x8] sm:$0xff]
    %v866 = vld [vmem:[%s3 + $0x10] sm:$0xff]
    %v867 = vld [vmem:[%s3 + $0x18] sm:$0xff]
    %v868 = vld [vmem:[%s3 + $0x20] sm:$0xff]
    %v869 = vld [vmem:[%s3 + $0x28] sm:$0xff]
    %v870 = vld [vmem:[%s3 + $0x30] sm:$0xff]
    %v871 = vld [vmem:[%s3 + $0x38] sm:$0xff]
    %v872 = vld [vmem:[%s4] sm:$0xff]
    %v873 = vld [vmem:[%s4 + $0x8] sm:$0xff]
    %v874 = vld [vmem:[%s4 + $0x10] sm:$0xff]
    %v875 = vld [vmem:[%s4 + $0x18] sm:$0xff]
    %v876 = vld [vmem:[%s4 + $0x20] sm:$0xff]
    %v877 = vld [vmem:[%s4 + $0x28] sm:$0xff]
    %v878 = vld [vmem:[%s4 + $0x30] sm:$0xff]
    %v879 = vld [vmem:[%s4 + $0x38] sm:$0xff]
    %881 = vset.pattern.permute.xlu0 0
    %882 = vperm.xlu0 %881, %v872
    %v883 = vpop.permute.xlu0 %882
    %886 = vset.pattern.permute.xlu0 0
    %887 = vperm.xlu0 %886, %v873
    %v888 = vpop.permute.xlu0 %887
    %891 = vset.pattern.permute.xlu0 0
    %892 = vperm.xlu0 %891, %v874
    %v893 = vpop.permute.xlu0 %892
    %896 = vset.pattern.permute.xlu0 0
    %897 = vperm.xlu0 %896, %v875
    %v898 = vpop.permute.xlu0 %897
    %901 = vset.pattern.permute.xlu0 0
    %902 = vperm.xlu0 %901, %v876
    %v903 = vpop.permute.xlu0 %902
    %906 = vset.pattern.permute.xlu0 0
    %907 = vperm.xlu0 %906, %v877
    %v908 = vpop.permute.xlu0 %907
    %911 = vset.pattern.permute.xlu0 0
    %912 = vperm.xlu0 %911, %v878
    %v913 = vpop.permute.xlu0 %912
    %916 = vset.pattern.permute.xlu0 0
    %917 = vperm.xlu0 %916, %v879
    %v918 = vpop.permute.xlu0 %917
    %vm920 = vcmask 523264
    %v922 = vsel %vm920, %v864, 0
    %v925 = vsel %vm920, %v865, 0
    %v928 = vsel %vm920, %v866, 0
    %v931 = vsel %vm920, %v867, 0
    %v934 = vsel %vm920, %v868, 0
    %v937 = vsel %vm920, %v869, 0
    %v940 = vsel %vm920, %v870, 0
    %v943 = vsel %vm920, %v871, 0
    %945 = vmatprep.subr.mxu0 0.0
    %v946 = vand.u32 %v856, 4294901760
    %947 = vmatpush1.msra.mxu0 %v946
    %948 = vmatprep.subr.mxu0 0.0
    %v949 = vand.u32 %v857, 4294901760
    %950 = vmatpush1.msra.mxu0 %v949
    %951 = vmatprep.subr.mxu0 0.0
    %v952 = vand.u32 %v858, 4294901760
    %953 = vmatpush1.msra.mxu0 %v952
    %954 = vmatprep.subr.mxu0 0.0
    %v955 = vand.u32 %v859, 4294901760
    %956 = vmatpush1.msra.mxu0 %v955
    %957 = vmatprep.subr.mxu0 0.0
    %v958 = vand.u32 %v860, 4294901760
    %959 = vmatpush1.msra.mxu0 %v958
    %960 = vmatprep.subr.mxu0 0.0
    %v961 = vand.u32 %v861, 4294901760
    %962 = vmatpush1.msra.mxu0 %v961
    %963 = vmatprep.subr.mxu0 0.0
    %v964 = vand.u32 %v862, 4294901760
    %965 = vmatpush1.msra.mxu0 %v964
    %966 = vmatprep.subr.mxu0 0.0
    %v967 = vand.u32 %v863, 4294901760
    %968 = vmatpush1.msra.mxu0 %v967
    %969 = vmatprep.subr.mxu0 0.0
    %970 = vmatpush1.msra.mxu0 0.0
    %971 = vmatprep.subr.mxu0 0.0
    %972 = vmatpush1.msra.mxu0 0.0
    %973 = vmatprep.subr.mxu0 0.0
    %974 = vmatpush1.msra.mxu0 0.0
    %975 = vmatprep.subr.mxu0 0.0
    %976 = vmatpush1.msra.mxu0 0.0
    %977 = vmatprep.subr.mxu0 0.0
    %978 = vmatpush1.msra.mxu0 0.0
    %979 = vmatprep.subr.mxu0 0.0
    %980 = vmatpush1.msra.mxu0 0.0
    %981 = vmatprep.subr.mxu0 0.0
    %982 = vmatpush1.msra.mxu0 0.0
    %983 = vmatprep.subr.mxu0 0.0
    %984 = vmatpush1.msra.mxu0 0.0
    %985 = vmatprep.subr.mxu0 0.0
    %986 = vmatpush1.msra.mxu0 0.0
    %987 = vmatprep.subr.mxu0 0.0
    %988 = vmatpush1.msra.mxu0 0.0
    %989 = vmatprep.subr.mxu0 0.0
    %990 = vmatpush1.msra.mxu0 0.0
    %991 = vmatprep.subr.mxu0 0.0
    %992 = vmatpush1.msra.mxu0 0.0
    %993 = vmatprep.subr.mxu0 0.0
    %994 = vmatpush1.msra.mxu0 0.0
    %995 = vmatprep.subr.mxu0 0.0
    %996 = vmatpush1.msra.mxu0 0.0
    %997 = vmatprep.subr.mxu0 0.0
    %998 = vmatpush1.msra.mxu0 0.0
    %999 = vmatprep.subr.mxu0 0.0
    %1000 = vmatpush1.msra.mxu0 0.0
    %1001 = vmatprep.subr.mxu0 0.0
    %1002 = vmatpush1.msra.mxu0 0.0
    %1003 = vmatprep.subr.mxu0 0.0
    %1004 = vmatpush1.msra.mxu0 0.0
    %1005 = vmatprep.subr.mxu0 0.0
    %1006 = vmatpush1.msra.mxu0 0.0
    %1007 = vmatprep.subr.mxu0 0.0
    %1008 = vmatpush1.msra.mxu0 0.0
    %1009 = vmatprep.subr.mxu0 0.0
    %1010 = vmatpush1.msra.mxu0 0.0
    %1011 = vmatprep.subr.mxu0 0.0
    %1012 = vmatpush1.msra.mxu0 0.0
    %1013 = vmatprep.subr.mxu0 0.0
    %1014 = vmatpush1.msra.mxu0 0.0
    %1015 = vmatprep.subr.mxu0 0.0
    %1016 = vmatpush1.msra.mxu0 0.0
    %1017 = vmatprep.mubr.f32.mxu0 0.0
    %v1018 = vand.u32 %v922, 4294901760
    %v1019 = vsub.f32 %v922, %v1018
    %v1020 = vand.u32 %v1019, 4294901760
    %v1021 = vsub.f32 %v1019, %v1020
    %v1022 = vand.u32 %v1021, 4294901760
    %1023 = vmatmul.mubr.f32.gmra.mrb[0].mxu0 %v1022
    %v1024 = vpop.f32.mrb[0].mxu0
    %v1025 = vadd.f32 %v883, %v1024
    %v1026 = vpop.f32.mrb[0].mxu0
    %1027 = vmatprep.mubr.f32.mxu0 0.0
    %v1028 = vand.u32 %v925, 4294901760
    %v1029 = vsub.f32 %v925, %v1028
    %v1030 = vand.u32 %v1029, 4294901760
    %v1031 = vsub.f32 %v1029, %v1030
    %v1032 = vand.u32 %v1031, 4294901760
    %1033 = vmatmul.mubr.f32.gmra.mrb[0].mxu0 %v1032
    %v1034 = vpop.f32.mrb[0].mxu0
    %v1035 = vadd.f32 %v888, %v1034
    %v1036 = vpop.f32.mrb[0].mxu0
    %1037 = vmatprep.mubr.f32.mxu0 0.0
    %v1038 = vand.u32 %v928, 4294901760
    %v1039 = vsub.f32 %v928, %v1038
    %v1040 = vand.u32 %v1039, 4294901760
    %v1041 = vsub.f32 %v1039, %v1040
    %v1042 = vand.u32 %v1041, 4294901760
    %1043 = vmatmul.mubr.f32.gmra.mrb[0].mxu0 %v1042
    %v1044 = vpop.f32.mrb[0].mxu0
    %v1045 = vadd.f32 %v893, %v1044
    %v1046 = vpop.f32.mrb[0].mxu0
    %1047 = vmatprep.mubr.f32.mxu0 0.0
    %v1048 = vand.u32 %v931, 4294901760
    %v1049 = vsub.f32 %v931, %v1048
    %v1050 = vand.u32 %v1049, 4294901760
    %v1051 = vsub.f32 %v1049, %v1050
    %v1052 = vand.u32 %v1051, 4294901760
    %1053 = vmatmul.mubr.f32.gmra.mrb[0].mxu0 %v1052
    %v1054 = vpop.f32.mrb[0].mxu0
    %v1055 = vadd.f32 %v898, %v1054
    %v1056 = vpop.f32.mrb[0].mxu0
    %1057 = vmatprep.mubr.f32.mxu0 0.0
    %v1058 = vand.u32 %v934, 4294901760
    %v1059 = vsub.f32 %v934, %v1058
    %v1060 = vand.u32 %v1059, 4294901760
    %v1061 = vsub.f32 %v1059, %v1060
    %v1062 = vand.u32 %v1061, 4294901760
    %1063 = vmatmul.mubr.f32.gmra.mrb[0].mxu0 %v1062
    %v1064 = vpop.f32.mrb[0].mxu0
    %v1065 = vadd.f32 %v903, %v1064
    %v1066 = vpop.f32.mrb[0].mxu0
    %1067 = vmatprep.mubr.f32.mxu0 0.0
    %v1068 = vand.u32 %v937, 4294901760
    %v1069 = vsub.f32 %v937, %v1068
    %v1070 = vand.u32 %v1069, 4294901760
    %v1071 = vsub.f32 %v1069, %v1070
    %v1072 = vand.u32 %v1071, 4294901760
    %1073 = vmatmul.mubr.f32.gmra.mrb[0].mxu0 %v1072
    %v1074 = vpop.f32.mrb[0].mxu0
    %v1075 = vadd.f32 %v908, %v1074
    %v1076 = vpop.f32.mrb[0].mxu0
    %1077 = vmatprep.mubr.f32.mxu0 0.0
    %v1078 = vand.u32 %v940, 4294901760
    %v1079 = vsub.f32 %v940, %v1078
    %v1080 = vand.u32 %v1079, 4294901760
    %v1081 = vsub.f32 %v1079, %v1080
    %v1082 = vand.u32 %v1081, 4294901760
    %1083 = vmatmul.mubr.f32.gmra.mrb[0].mxu0 %v1082
    %v1084 = vpop.f32.mrb[0].mxu0
    %v1085 = vadd.f32 %v913, %v1084
    %v1086 = vpop.f32.mrb[0].mxu0
    %1087 = vmatprep.mubr.f32.mxu0 0.0
    %v1088 = vand.u32 %v943, 4294901760
    %v1089 = vsub.f32 %v943, %v1088
    %v1090 = vand.u32 %v1089, 4294901760
    %v1091 = vsub.f32 %v1089, %v1090
    %v1092 = vand.u32 %v1091, 4294901760
    %1093 = vmatmul.mubr.f32.gmra.mrb[0].mxu0 %v1092
    %v1094 = vpop.f32.mrb[0].mxu0
    %v1095 = vadd.f32 %v918, %v1094
    %v1096 = vpop.f32.mrb[0].mxu0
    %1097 = vdwg.mxu0
    %1098 = vmatprep.subr.mxu0 0.0
    %v1099 = vand.u32 %v856, 4294901760
    %v1100 = vsub.f32 %v856, %v1099
    %v1101 = vand.u32 %v1100, 4294901760
    %v1102 = vsub.f32 %v1100, %v1101
    %v1103 = vand.u32 %v1102, 4294901760
    %1104 = vmatpush1.msra.mxu0 %v1103
    %1105 = vmatprep.subr.mxu0 0.0
    %v1106 = vand.u32 %v857, 4294901760
    %v1107 = vsub.f32 %v857, %v1106
    %v1108 = vand.u32 %v1107, 4294901760
    %v1109 = vsub.f32 %v1107, %v1108
    %v1110 = vand.u32 %v1109, 4294901760
    %1111 = vmatpush1.msra.mxu0 %v1110
    %1112 = vmatprep.subr.mxu0 0.0
    %v1113 = vand.u32 %v858, 4294901760
    %v1114 = vsub.f32 %v858, %v1113
    %v1115 = vand.u32 %v1114, 4294901760
    %v1116 = vsub.f32 %v1114, %v1115
    %v1117 = vand.u32 %v1116, 4294901760
    %1118 = vmatpush1.msra.mxu0 %v1117
    %1119 = vmatprep.subr.mxu0 0.0
    %v1120 = vand.u32 %v859, 4294901760
    %v1121 = vsub.f32 %v859, %v1120
    %v1122 = vand.u32 %v1121, 4294901760
    %v1123 = vsub.f32 %v1121, %v1122
    %v1124 = vand.u32 %v1123, 4294901760
    %1125 = vmatpush1.msra.mxu0 %v1124
    %1126 = vmatprep.subr.mxu0 0.0
    %v1127 = vand.u32 %v860, 4294901760
    %v1128 = vsub.f32 %v860, %v1127
    %v1129 = vand.u32 %v1128, 4294901760
    %v1130 = vsub.f32 %v1128, %v1129
    %v1131 = vand.u32 %v1130, 4294901760
    %1132 = vmatpush1.msra.mxu0 %v1131
    %1133 = vmatprep.subr.mxu0 0.0
    %v1134 = vand.u32 %v861, 4294901760
    %v1135 = vsub.f32 %v861, %v1134
    %v1136 = vand.u32 %v1135, 4294901760
    %v1137 = vsub.f32 %v1135, %v1136
    %v1138 = vand.u32 %v1137, 4294901760
    %1139 = vmatpush1.msra.mxu0 %v1138
    %1140 = vmatprep.subr.mxu0 0.0
    %v1141 = vand.u32 %v862, 4294901760
    %v1142 = vsub.f32 %v862, %v1141
    %v1143 = vand.u32 %v1142, 4294901760
    %v1144 = vsub.f32 %v1142, %v1143
    %v1145 = vand.u32 %v1144, 4294901760
    %1146 = vmatpush1.msra.mxu0 %v1145
    %1147 = vmatprep.subr.mxu0 0.0
    %v1148 = vand.u32 %v863, 4294901760
    %v1149 = vsub.f32 %v863, %v1148
    %v1150 = vand.u32 %v1149, 4294901760
    %v1151 = vsub.f32 %v1149, %v1150
    %v1152 = vand.u32 %v1151, 4294901760
    %1153 = vmatpush1.msra.mxu0 %v1152
    %1154 = vmatprep.subr.mxu0 0.0
    %1155 = vmatpush1.msra.mxu0 0.0
    %1156 = vmatprep.subr.mxu0 0.0
    %1157 = vmatpush1.msra.mxu0 0.0
    %1158 = vmatprep.subr.mxu0 0.0
    %1159 = vmatpush1.msra.mxu0 0.0
    %1160 = vmatprep.subr.mxu0 0.0
    %1161 = vmatpush1.msra.mxu0 0.0
    %1162 = vmatprep.subr.mxu0 0.0
    %1163 = vmatpush1.msra.mxu0 0.0
    %1164 = vmatprep.subr.mxu0 0.0
    %1165 = vmatpush1.msra.mxu0 0.0
    %1166 = vmatprep.subr.mxu0 0.0
    %1167 = vmatpush1.msra.mxu0 0.0
    %1168 = vmatprep.subr.mxu0 0.0
    %1169 = vmatpush1.msra.mxu0 0.0
    %1170 = vmatprep.subr.mxu0 0.0
    %1171 = vmatpush1.msra.mxu0 0.0
    %1172 = vmatprep.subr.mxu0 0.0
    %1173 = vmatpush1.msra.mxu0 0.0
    %1174 = vmatprep.subr.mxu0 0.0
    %1175 = vmatpush1.msra.mxu0 0.0
    %1176 = vmatprep.subr.mxu0 0.0
    %1177 = vmatpush1.msra.mxu0 0.0
    %1178 = vmatprep.subr.mxu0 0.0
    %1179 = vmatpush1.msra.mxu0 0.0
    %1180 = vmatprep.subr.mxu0 0.0
    %1181 = vmatpush1.msra.mxu0 0.0
    %1182 = vmatprep.subr.mxu0 0.0
    %1183 = vmatpush1.msra.mxu0 0.0
    %1184 = vmatprep.subr.mxu0 0.0
    %1185 = vmatpush1.msra.mxu0 0.0
    %1186 = vmatprep.subr.mxu0 0.0
    %1187 = vmatpush1.msra.mxu0 0.0
    %1188 = vmatprep.subr.mxu0 0.0
    %1189 = vmatpush1.msra.mxu0 0.0
    %1190 = vmatprep.subr.mxu0 0.0
    %1191 = vmatpush1.msra.mxu0 0.0
    %1192 = vmatprep.subr.mxu0 0.0
    %1193 = vmatpush1.msra.mxu0 0.0
    %1194 = vmatprep.subr.mxu0 0.0
    %1195 = vmatpush1.msra.mxu0 0.0
    %1196 = vmatprep.subr.mxu0 0.0
    %1197 = vmatpush1.msra.mxu0 0.0
    %1198 = vmatprep.subr.mxu0 0.0
    %1199 = vmatpush1.msra.mxu0 0.0
    %1200 = vmatprep.subr.mxu0 0.0
    %1201 = vmatpush1.msra.mxu0 0.0
    %1202 = vmatprep.mubr.f32.mxu0 0.0
    %v1203 = vand.u32 %v922, 4294901760
    %1204 = vmatmul.mubr.f32.gmra.mrb[0].mxu0 %v1203
    %v1205 = vpop.f32.mrb[0].mxu0
    %v1206 = vadd.f32 %v1025, %v1205
    %v1207 = vpop.f32.mrb[0].mxu0
    %1208 = vmatprep.mubr.f32.mxu0 0.0
    %v1209 = vand.u32 %v925, 4294901760
    %1210 = vmatmul.mubr.f32.gmra.mrb[0].mxu0 %v1209
    %v1211 = vpop.f32.mrb[0].mxu0
    %v1212 = vadd.f32 %v1035, %v1211
    %v1213 = vpop.f32.mrb[0].mxu0
    %1214 = vmatprep.mubr.f32.mxu0 0.0
    %v1215 = vand.u32 %v928, 4294901760
    %1216 = vmatmul.mubr.f32.gmra.mrb[0].mxu0 %v1215
    %v1217 = vpop.f32.mrb[0].mxu0
    %v1218 = vadd.f32 %v1045, %v1217
    %v1219 = vpop.f32.mrb[0].mxu0
    %1220 = vmatprep.mubr.f32.mxu0 0.0
    %v1221 = vand.u32 %v931, 4294901760
    %1222 = vmatmul.mubr.f32.gmra.mrb[0].mxu0 %v1221
    %v1223 = vpop.f32.mrb[0].mxu0
    %v1224 = vadd.f32 %v1055, %v1223
    %v1225 = vpop.f32.mrb[0].mxu0
    %1226 = vmatprep.mubr.f32.mxu0 0.0
    %v1227 = vand.u32 %v934, 4294901760
    %1228 = vmatmul.mubr.f32.gmra.mrb[0].mxu0 %v1227
    %v1229 = vpop.f32.mrb[0].mxu0
    %v1230 = vadd.f32 %v1065, %v1229
    %v1231 = vpop.f32.mrb[0].mxu0
    %1232 = vmatprep.mubr.f32.mxu0 0.0
    %v1233 = vand.u32 %v937, 4294901760
    %1234 = vmatmul.mubr.f32.gmra.mrb[0].mxu0 %v1233
    %v1235 = vpop.f32.mrb[0].mxu0
    %v1236 = vadd.f32 %v1075, %v1235
    %v1237 = vpop.f32.mrb[0].mxu0
    %1238 = vmatprep.mubr.f32.mxu0 0.0
    %v1239 = vand.u32 %v940, 4294901760
    %1240 = vmatmul.mubr.f32.gmra.mrb[0].mxu0 %v1239
    %v1241 = vpop.f32.mrb[0].mxu0
    %v1242 = vadd.f32 %v1085, %v1241
    %v1243 = vpop.f32.mrb[0].mxu0
    %1244 = vmatprep.mubr.f32.mxu0 0.0
    %v1245 = vand.u32 %v943, 4294901760
    %1246 = vmatmul.mubr.f32.gmra.mrb[0].mxu0 %v1245
    %v1247 = vpop.f32.mrb[0].mxu0
    %v1248 = vadd.f32 %v1095, %v1247
    %v1249 = vpop.f32.mrb[0].mxu0
    %1250 = vdwg.mxu0
    %1251 = vmatprep.subr.mxu0 0.0
    %v1252 = vand.u32 %v856, 4294901760
    %v1253 = vsub.f32 %v856, %v1252
    %1254 = vmatpush1.msra.mxu0 %v1253
    %1255 = vmatprep.subr.mxu0 0.0
    %v1256 = vand.u32 %v857, 4294901760
    %v1257 = vsub.f32 %v857, %v1256
    %1258 = vmatpush1.msra.mxu0 %v1257
    %1259 = vmatprep.subr.mxu0 0.0
    %v1260 = vand.u32 %v858, 4294901760
    %v1261 = vsub.f32 %v858, %v1260
    %1262 = vmatpush1.msra.mxu0 %v1261
    %1263 = vmatprep.subr.mxu0 0.0
    %v1264 = vand.u32 %v859, 4294901760
    %v1265 = vsub.f32 %v859, %v1264
    %1266 = vmatpush1.msra.mxu0 %v1265
    %1267 = vmatprep.subr.mxu0 0.0
    %v1268 = vand.u32 %v860, 4294901760
    %v1269 = vsub.f32 %v860, %v1268
    %1270 = vmatpush1.msra.mxu0 %v1269
    %1271 = vmatprep.subr.mxu0 0.0
    %v1272 = vand.u32 %v861, 4294901760
    %v1273 = vsub.f32 %v861, %v1272
    %1274 = vmatpush1.msra.mxu0 %v1273
    %1275 = vmatprep.subr.mxu0 0.0
    %v1276 = vand.u32 %v862, 4294901760
    %v1277 = vsub.f32 %v862, %v1276
    %1278 = vmatpush1.msra.mxu0 %v1277
    %1279 = vmatprep.subr.mxu0 0.0
    %v1280 = vand.u32 %v863, 4294901760
    %v1281 = vsub.f32 %v863, %v1280
    %1282 = vmatpush1.msra.mxu0 %v1281
    %1283 = vmatprep.subr.mxu0 0.0
    %1284 = vmatpush1.msra.mxu0 0.0
    %1285 = vmatprep.subr.mxu0 0.0
    %1286 = vmatpush1.msra.mxu0 0.0
    %1287 = vmatprep.subr.mxu0 0.0
    %1288 = vmatpush1.msra.mxu0 0.0
    %1289 = vmatprep.subr.mxu0 0.0
    %1290 = vmatpush1.msra.mxu0 0.0
    %1291 = vmatprep.subr.mxu0 0.0
    %1292 = vmatpush1.msra.mxu0 0.0
    %1293 = vmatprep.subr.mxu0 0.0
    %1294 = vmatpush1.msra.mxu0 0.0
    %1295 = vmatprep.subr.mxu0 0.0
    %1296 = vmatpush1.msra.mxu0 0.0
    %1297 = vmatprep.subr.mxu0 0.0
    %1298 = vmatpush1.msra.mxu0 0.0
    %1299 = vmatprep.subr.mxu0 0.0
    %1300 = vmatpush1.msra.mxu0 0.0
    %1301 = vmatprep.subr.mxu0 0.0
    %1302 = vmatpush1.msra.mxu0 0.0
    %1303 = vmatprep.subr.mxu0 0.0
    %1304 = vmatpush1.msra.mxu0 0.0
    %1305 = vmatprep.subr.mxu0 0.0
    %1306 = vmatpush1.msra.mxu0 0.0
    %1307 = vmatprep.subr.mxu0 0.0
    %1308 = vmatpush1.msra.mxu0 0.0
    %1309 = vmatprep.subr.mxu0 0.0
    %1310 = vmatpush1.msra.mxu0 0.0
    %1311 = vmatprep.subr.mxu0 0.0
    %1312 = vmatpush1.msra.mxu0 0.0
    %1313 = vmatprep.subr.mxu0 0.0
    %1314 = vmatpush1.msra.mxu0 0.0
    %1315 = vmatprep.subr.mxu0 0.0
    %1316 = vmatpush1.msra.mxu0 0.0
    %1317 = vmatprep.subr.mxu0 0.0
    %1318 = vmatpush1.msra.mxu0 0.0
    %1319 = vmatprep.subr.mxu0 0.0
    %1320 = vmatpush1.msra.mxu0 0.0
    %1321 = vmatprep.subr.mxu0 0.0
    %1322 = vmatpush1.msra.mxu0 0.0
    %1323 = vmatprep.subr.mxu0 0.0
    %1324 = vmatpush1.msra.mxu0 0.0
    %1325 = vmatprep.subr.mxu0 0.0
    %1326 = vmatpush1.msra.mxu0 0.0
    %1327 = vmatprep.subr.mxu0 0.0
    %1328 = vmatpush1.msra.mxu0 0.0
    %1329 = vmatprep.subr.mxu0 0.0
    %1330 = vmatpush1.msra.mxu0 0.0
    %1331 = vmatprep.mubr.f32.mxu0 0.0
    %v1332 = vand.u32 %v922, 4294901760
    %v1333 = vsub.f32 %v922, %v1332
    %1334 = vmatmul.mubr.f32.gmra.mrb[0].mxu0 %v1333
    %v1335 = vpop.f32.mrb[0].mxu0
    %v1336 = vadd.f32 %v1206, %v1335
    %v1337 = vpop.f32.mrb[0].mxu0
    %1338 = vmatprep.mubr.f32.mxu0 0.0
    %v1339 = vand.u32 %v925, 4294901760
    %v1340 = vsub.f32 %v925, %v1339
    %1341 = vmatmul.mubr.f32.gmra.mrb[0].mxu0 %v1340
    %v1342 = vpop.f32.mrb[0].mxu0
    %v1343 = vadd.f32 %v1212, %v1342
    %v1344 = vpop.f32.mrb[0].mxu0
    %1345 = vmatprep.mubr.f32.mxu0 0.0
    %v1346 = vand.u32 %v928, 4294901760
    %v1347 = vsub.f32 %v928, %v1346
    %1348 = vmatmul.mubr.f32.gmra.mrb[0].mxu0 %v1347
    %v1349 = vpop.f32.mrb[0].mxu0
    %v1350 = vadd.f32 %v1218, %v1349
    %v1351 = vpop.f32.mrb[0].mxu0
    %1352 = vmatprep.mubr.f32.mxu0 0.0
    %v1353 = vand.u32 %v931, 4294901760
    %v1354 = vsub.f32 %v931, %v1353
    %1355 = vmatmul.mubr.f32.gmra.mrb[0].mxu0 %v1354
    %v1356 = vpop.f32.mrb[0].mxu0
    %v1357 = vadd.f32 %v1224, %v1356
    %v1358 = vpop.f32.mrb[0].mxu0
    %1359 = vmatprep.mubr.f32.mxu0 0.0
    %v1360 = vand.u32 %v934, 4294901760
    %v1361 = vsub.f32 %v934, %v1360
    %1362 = vmatmul.mubr.f32.gmra.mrb[0].mxu0 %v1361
    %v1363 = vpop.f32.mrb[0].mxu0
    %v1364 = vadd.f32 %v1230, %v1363
    %v1365 = vpop.f32.mrb[0].mxu0
    %1366 = vmatprep.mubr.f32.mxu0 0.0
    %v1367 = vand.u32 %v937, 4294901760
    %v1368 = vsub.f32 %v937, %v1367
    %1369 = vmatmul.mubr.f32.gmra.mrb[0].mxu0 %v1368
    %v1370 = vpop.f32.mrb[0].mxu0
    %v1371 = vadd.f32 %v1236, %v1370
    %v1372 = vpop.f32.mrb[0].mxu0
    %1373 = vmatprep.mubr.f32.mxu0 0.0
    %v1374 = vand.u32 %v940, 4294901760
    %v1375 = vsub.f32 %v940, %v1374
    %1376 = vmatmul.mubr.f32.gmra.mrb[0].mxu0 %v1375
    %v1377 = vpop.f32.mrb[0].mxu0
    %v1378 = vadd.f32 %v1242, %v1377
    %v1379 = vpop.f32.mrb[0].mxu0
    %1380 = vmatprep.mubr.f32.mxu0 0.0
    %v1381 = vand.u32 %v943, 4294901760
    %v1382 = vsub.f32 %v943, %v1381
    %1383 = vmatmul.mubr.f32.gmra.mrb[0].mxu0 %v1382
    %v1384 = vpop.f32.mrb[0].mxu0
    %v1385 = vadd.f32 %v1248, %v1384
    %v1386 = vpop.f32.mrb[0].mxu0
    %1387 = vdwg.mxu0
    %1388 = vmatprep.subr.mxu0 0.0
    %v1389 = vand.u32 %v856, 4294901760
    %1390 = vmatpush1.msra.mxu0 %v1389
    %1391 = vmatprep.subr.mxu0 0.0
    %v1392 = vand.u32 %v857, 4294901760
    %1393 = vmatpush1.msra.mxu0 %v1392
    %1394 = vmatprep.subr.mxu0 0.0
    %v1395 = vand.u32 %v858, 4294901760
    %1396 = vmatpush1.msra.mxu0 %v1395
    %1397 = vmatprep.subr.mxu0 0.0
    %v1398 = vand.u32 %v859, 4294901760
    %1399 = vmatpush1.msra.mxu0 %v1398
    %1400 = vmatprep.subr.mxu0 0.0
    %v1401 = vand.u32 %v860, 4294901760
    %1402 = vmatpush1.msra.mxu0 %v1401
    %1403 = vmatprep.subr.mxu0 0.0
    %v1404 = vand.u32 %v861, 4294901760
    %1405 = vmatpush1.msra.mxu0 %v1404
    %1406 = vmatprep.subr.mxu0 0.0
    %v1407 = vand.u32 %v862, 4294901760
    %1408 = vmatpush1.msra.mxu0 %v1407
    %1409 = vmatprep.subr.mxu0 0.0
    %v1410 = vand.u32 %v863, 4294901760
    %1411 = vmatpush1.msra.mxu0 %v1410
    %1412 = vmatprep.subr.mxu0 0.0
    %1413 = vmatpush1.msra.mxu0 0.0
    %1414 = vmatprep.subr.mxu0 0.0
    %1415 = vmatpush1.msra.mxu0 0.0
    %1416 = vmatprep.subr.mxu0 0.0
    %1417 = vmatpush1.msra.mxu0 0.0
    %1418 = vmatprep.subr.mxu0 0.0
    %1419 = vmatpush1.msra.mxu0 0.0
    %1420 = vmatprep.subr.mxu0 0.0
    %1421 = vmatpush1.msra.mxu0 0.0
    %1422 = vmatprep.subr.mxu0 0.0
    %1423 = vmatpush1.msra.mxu0 0.0
    %1424 = vmatprep.subr.mxu0 0.0
    %1425 = vmatpush1.msra.mxu0 0.0
    %1426 = vmatprep.subr.mxu0 0.0
    %1427 = vmatpush1.msra.mxu0 0.0
    %1428 = vmatprep.subr.mxu0 0.0
    %1429 = vmatpush1.msra.mxu0 0.0
    %1430 = vmatprep.subr.mxu0 0.0
    %1431 = vmatpush1.msra.mxu0 0.0
    %1432 = vmatprep.subr.mxu0 0.0
    %1433 = vmatpush1.msra.mxu0 0.0
    %1434 = vmatprep.subr.mxu0 0.0
    %1435 = vmatpush1.msra.mxu0 0.0
    %1436 = vmatprep.subr.mxu0 0.0
    %1437 = vmatpush1.msra.mxu0 0.0
    %1438 = vmatprep.subr.mxu0 0.0
    %1439 = vmatpush1.msra.mxu0 0.0
    %1440 = vmatprep.subr.mxu0 0.0
    %1441 = vmatpush1.msra.mxu0 0.0
    %1442 = vmatprep.subr.mxu0 0.0
    %1443 = vmatpush1.msra.mxu0 0.0
    %1444 = vmatprep.subr.mxu0 0.0
    %1445 = vmatpush1.msra.mxu0 0.0
    %1446 = vmatprep.subr.mxu0 0.0
    %1447 = vmatpush1.msra.mxu0 0.0
    %1448 = vmatprep.subr.mxu0 0.0
    %1449 = vmatpush1.msra.mxu0 0.0
    %1450 = vmatprep.subr.mxu0 0.0
    %1451 = vmatpush1.msra.mxu0 0.0
    %1452 = vmatprep.subr.mxu0 0.0
    %1453 = vmatpush1.msra.mxu0 0.0
    %1454 = vmatprep.subr.mxu0 0.0
    %1455 = vmatpush1.msra.mxu0 0.0
    %1456 = vmatprep.subr.mxu0 0.0
    %1457 = vmatpush1.msra.mxu0 0.0
    %1458 = vmatprep.subr.mxu0 0.0
    %1459 = vmatpush1.msra.mxu0 0.0
    %1460 = vmatprep.mubr.f32.mxu0 0.0
    %v1461 = vand.u32 %v922, 4294901760
    %v1462 = vsub.f32 %v922, %v1461
    %v1463 = vand.u32 %v1462, 4294901760
    %1464 = vmatmul.mubr.f32.gmra.mrb[0].mxu0 %v1463
    %v1465 = vpop.f32.mrb[0].mxu0
    %v1466 = vadd.f32 %v1336, %v1465
    %v1467 = vpop.f32.mrb[0].mxu0
    %1468 = vmatprep.mubr.f32.mxu0 0.0
    %v1469 = vand.u32 %v925, 4294901760
    %v1470 = vsub.f32 %v925, %v1469
    %v1471 = vand.u32 %v1470, 4294901760
    %1472 = vmatmul.mubr.f32.gmra.mrb[0].mxu0 %v1471
    %v1473 = vpop.f32.mrb[0].mxu0
    %v1474 = vadd.f32 %v1343, %v1473
    %v1475 = vpop.f32.mrb[0].mxu0
    %1476 = vmatprep.mubr.f32.mxu0 0.0
    %v1477 = vand.u32 %v928, 4294901760
    %v1478 = vsub.f32 %v928, %v1477
    %v1479 = vand.u32 %v1478, 4294901760
    %1480 = vmatmul.mubr.f32.gmra.mrb[0].mxu0 %v1479
    %v1481 = vpop.f32.mrb[0].mxu0
    %v1482 = vadd.f32 %v1350, %v1481
    %v1483 = vpop.f32.mrb[0].mxu0
    %1484 = vmatprep.mubr.f32.mxu0 0.0
    %v1485 = vand.u32 %v931, 4294901760
    %v1486 = vsub.f32 %v931, %v1485
    %v1487 = vand.u32 %v1486, 4294901760
    %1488 = vmatmul.mubr.f32.gmra.mrb[0].mxu0 %v1487
    %v1489 = vpop.f32.mrb[0].mxu0
    %v1490 = vadd.f32 %v1357, %v1489
    %v1491 = vpop.f32.mrb[0].mxu0
    %1492 = vmatprep.mubr.f32.mxu0 0.0
    %v1493 = vand.u32 %v934, 4294901760
    %v1494 = vsub.f32 %v934, %v1493
    %v1495 = vand.u32 %v1494, 4294901760
    %1496 = vmatmul.mubr.f32.gmra.mrb[0].mxu0 %v1495
    %v1497 = vpop.f32.mrb[0].mxu0
    %v1498 = vadd.f32 %v1364, %v1497
    %v1499 = vpop.f32.mrb[0].mxu0
    %1500 = vmatprep.mubr.f32.mxu0 0.0
    %v1501 = vand.u32 %v937, 4294901760
    %v1502 = vsub.f32 %v937, %v1501
    %v1503 = vand.u32 %v1502, 4294901760
    %1504 = vmatmul.mubr.f32.gmra.mrb[0].mxu0 %v1503
    %v1505 = vpop.f32.mrb[0].mxu0
    %v1506 = vadd.f32 %v1371, %v1505
    %v1507 = vpop.f32.mrb[0].mxu0
    %1508 = vmatprep.mubr.f32.mxu0 0.0
    %v1509 = vand.u32 %v940, 4294901760
    %v1510 = vsub.f32 %v940, %v1509
    %v1511 = vand.u32 %v1510, 4294901760
    %1512 = vmatmul.mubr.f32.gmra.mrb[0].mxu0 %v1511
    %v1513 = vpop.f32.mrb[0].mxu0
    %v1514 = vadd.f32 %v1378, %v1513
    %v1515 = vpop.f32.mrb[0].mxu0
    %1516 = vmatprep.mubr.f32.mxu0 0.0
    %v1517 = vand.u32 %v943, 4294901760
    %v1518 = vsub.f32 %v943, %v1517
    %v1519 = vand.u32 %v1518, 4294901760
    %1520 = vmatmul.mubr.f32.gmra.mrb[0].mxu0 %v1519
    %v1521 = vpop.f32.mrb[0].mxu0
    %v1522 = vadd.f32 %v1385, %v1521
    %v1523 = vpop.f32.mrb[0].mxu0
    %1524 = vdwg.mxu0
    %1525 = vmatprep.subr.mxu0 0.0
    %v1526 = vand.u32 %v856, 4294901760
    %v1527 = vsub.f32 %v856, %v1526
    %v1528 = vand.u32 %v1527, 4294901760
    %1529 = vmatpush1.msra.mxu0 %v1528
    %1530 = vmatprep.subr.mxu0 0.0
    %v1531 = vand.u32 %v857, 4294901760
    %v1532 = vsub.f32 %v857, %v1531
    %v1533 = vand.u32 %v1532, 4294901760
    %1534 = vmatpush1.msra.mxu0 %v1533
    %1535 = vmatprep.subr.mxu0 0.0
    %v1536 = vand.u32 %v858, 4294901760
    %v1537 = vsub.f32 %v858, %v1536
    %v1538 = vand.u32 %v1537, 4294901760
    %1539 = vmatpush1.msra.mxu0 %v1538
    %1540 = vmatprep.subr.mxu0 0.0
    %v1541 = vand.u32 %v859, 4294901760
    %v1542 = vsub.f32 %v859, %v1541
    %v1543 = vand.u32 %v1542, 4294901760
    %1544 = vmatpush1.msra.mxu0 %v1543
    %1545 = vmatprep.subr.mxu0 0.0
    %v1546 = vand.u32 %v860, 4294901760
    %v1547 = vsub.f32 %v860, %v1546
    %v1548 = vand.u32 %v1547, 4294901760
    %1549 = vmatpush1.msra.mxu0 %v1548
    %1550 = vmatprep.subr.mxu0 0.0
    %v1551 = vand.u32 %v861, 4294901760
    %v1552 = vsub.f32 %v861, %v1551
    %v1553 = vand.u32 %v1552, 4294901760
    %1554 = vmatpush1.msra.mxu0 %v1553
    %1555 = vmatprep.subr.mxu0 0.0
    %v1556 = vand.u32 %v862, 4294901760
    %v1557 = vsub.f32 %v862, %v1556
    %v1558 = vand.u32 %v1557, 4294901760
    %1559 = vmatpush1.msra.mxu0 %v1558
    %1560 = vmatprep.subr.mxu0 0.0
    %v1561 = vand.u32 %v863, 4294901760
    %v1562 = vsub.f32 %v863, %v1561
    %v1563 = vand.u32 %v1562, 4294901760
    %1564 = vmatpush1.msra.mxu0 %v1563
    %1565 = vmatprep.subr.mxu0 0.0
    %1566 = vmatpush1.msra.mxu0 0.0
    %1567 = vmatprep.subr.mxu0 0.0
    %1568 = vmatpush1.msra.mxu0 0.0
    %1569 = vmatprep.subr.mxu0 0.0
    %1570 = vmatpush1.msra.mxu0 0.0
    %1571 = vmatprep.subr.mxu0 0.0
    %1572 = vmatpush1.msra.mxu0 0.0
    %1573 = vmatprep.subr.mxu0 0.0
    %1574 = vmatpush1.msra.mxu0 0.0
    %1575 = vmatprep.subr.mxu0 0.0
    %1576 = vmatpush1.msra.mxu0 0.0
    %1577 = vmatprep.subr.mxu0 0.0
    %1578 = vmatpush1.msra.mxu0 0.0
    %1579 = vmatprep.subr.mxu0 0.0
    %1580 = vmatpush1.msra.mxu0 0.0
    %1581 = vmatprep.subr.mxu0 0.0
    %1582 = vmatpush1.msra.mxu0 0.0
    %1583 = vmatprep.subr.mxu0 0.0
    %1584 = vmatpush1.msra.mxu0 0.0
    %1585 = vmatprep.subr.mxu0 0.0
    %1586 = vmatpush1.msra.mxu0 0.0
    %1587 = vmatprep.subr.mxu0 0.0
    %1588 = vmatpush1.msra.mxu0 0.0
    %1589 = vmatprep.subr.mxu0 0.0
    %1590 = vmatpush1.msra.mxu0 0.0
    %1591 = vmatprep.subr.mxu0 0.0
    %1592 = vmatpush1.msra.mxu0 0.0
    %1593 = vmatprep.subr.mxu0 0.0
    %1594 = vmatpush1.msra.mxu0 0.0
    %1595 = vmatprep.subr.mxu0 0.0
    %1596 = vmatpush1.msra.mxu0 0.0
    %1597 = vmatprep.subr.mxu0 0.0
    %1598 = vmatpush1.msra.mxu0 0.0
    %1599 = vmatprep.subr.mxu0 0.0
    %1600 = vmatpush1.msra.mxu0 0.0
    %1601 = vmatprep.subr.mxu0 0.0
    %1602 = vmatpush1.msra.mxu0 0.0
    %1603 = vmatprep.subr.mxu0 0.0
    %1604 = vmatpush1.msra.mxu0 0.0
    %1605 = vmatprep.subr.mxu0 0.0
    %1606 = vmatpush1.msra.mxu0 0.0
    %1607 = vmatprep.subr.mxu0 0.0
    %1608 = vmatpush1.msra.mxu0 0.0
    %1609 = vmatprep.subr.mxu0 0.0
    %1610 = vmatpush1.msra.mxu0 0.0
    %1611 = vmatprep.subr.mxu0 0.0
    %1612 = vmatpush1.msra.mxu0 0.0
    %1613 = vmatprep.mubr.f32.mxu0 0.0
    %v1614 = vand.u32 %v922, 4294901760
    %1615 = vmatmul.mubr.f32.gmra.mrb[0].mxu0 %v1614
    %v1616 = vpop.f32.mrb[0].mxu0
    %v1617 = vadd.f32 %v1466, %v1616
    %v1618 = vpop.f32.mrb[0].mxu0
    %1619 = vmatprep.mubr.f32.mxu0 0.0
    %v1620 = vand.u32 %v925, 4294901760
    %1621 = vmatmul.mubr.f32.gmra.mrb[0].mxu0 %v1620
    %v1622 = vpop.f32.mrb[0].mxu0
    %v1623 = vadd.f32 %v1474, %v1622
    %v1624 = vpop.f32.mrb[0].mxu0
    %1625 = vmatprep.mubr.f32.mxu0 0.0
    %v1626 = vand.u32 %v928, 4294901760
    %1627 = vmatmul.mubr.f32.gmra.mrb[0].mxu0 %v1626
    %v1628 = vpop.f32.mrb[0].mxu0
    %v1629 = vadd.f32 %v1482, %v1628
    %v1630 = vpop.f32.mrb[0].mxu0
    %1631 = vmatprep.mubr.f32.mxu0 0.0
    %v1632 = vand.u32 %v931, 4294901760
    %1633 = vmatmul.mubr.f32.gmra.mrb[0].mxu0 %v1632
    %v1634 = vpop.f32.mrb[0].mxu0
    %v1635 = vadd.f32 %v1490, %v1634
    %v1636 = vpop.f32.mrb[0].mxu0
    %1637 = vmatprep.mubr.f32.mxu0 0.0
    %v1638 = vand.u32 %v934, 4294901760
    %1639 = vmatmul.mubr.f32.gmra.mrb[0].mxu0 %v1638
    %v1640 = vpop.f32.mrb[0].mxu0
    %v1641 = vadd.f32 %v1498, %v1640
    %v1642 = vpop.f32.mrb[0].mxu0
    %1643 = vmatprep.mubr.f32.mxu0 0.0
    %v1644 = vand.u32 %v937, 4294901760
    %1645 = vmatmul.mubr.f32.gmra.mrb[0].mxu0 %v1644
    %v1646 = vpop.f32.mrb[0].mxu0
    %v1647 = vadd.f32 %v1506, %v1646
    %v1648 = vpop.f32.mrb[0].mxu0
    %1649 = vmatprep.mubr.f32.mxu0 0.0
    %v1650 = vand.u32 %v940, 4294901760
    %1651 = vmatmul.mubr.f32.gmra.mrb[0].mxu0 %v1650
    %v1652 = vpop.f32.mrb[0].mxu0
    %v1653 = vadd.f32 %v1514, %v1652
    %v1654 = vpop.f32.mrb[0].mxu0
    %1655 = vmatprep.mubr.f32.mxu0 0.0
    %v1656 = vand.u32 %v943, 4294901760
    %1657 = vmatmul.mubr.f32.gmra.mrb[0].mxu0 %v1656
    %v1658 = vpop.f32.mrb[0].mxu0
    %v1659 = vadd.f32 %v1522, %v1658
    %v1660 = vpop.f32.mrb[0].mxu0
    %1661 = vdwg.mxu0
    %1662 = vmatprep.subr.mxu0 0.0
    %v1663 = vand.u32 %v856, 4294901760
    %1664 = vmatpush1.msra.mxu0 %v1663
    %1665 = vmatprep.subr.mxu0 0.0
    %v1666 = vand.u32 %v857, 4294901760
    %1667 = vmatpush1.msra.mxu0 %v1666
    %1668 = vmatprep.subr.mxu0 0.0
    %v1669 = vand.u32 %v858, 4294901760
    %1670 = vmatpush1.msra.mxu0 %v1669
    %1671 = vmatprep.subr.mxu0 0.0
    %v1672 = vand.u32 %v859, 4294901760
    %1673 = vmatpush1.msra.mxu0 %v1672
    %1674 = vmatprep.subr.mxu0 0.0
    %v1675 = vand.u32 %v860, 4294901760
    %1676 = vmatpush1.msra.mxu0 %v1675
    %1677 = vmatprep.subr.mxu0 0.0
    %v1678 = vand.u32 %v861, 4294901760
    %1679 = vmatpush1.msra.mxu0 %v1678
    %1680 = vmatprep.subr.mxu0 0.0
    %v1681 = vand.u32 %v862, 4294901760
    %1682 = vmatpush1.msra.mxu0 %v1681
    %1683 = vmatprep.subr.mxu0 0.0
    %v1684 = vand.u32 %v863, 4294901760
    %1685 = vmatpush1.msra.mxu0 %v1684
    %1686 = vmatprep.subr.mxu0 0.0
    %1687 = vmatpush1.msra.mxu0 0.0
    %1688 = vmatprep.subr.mxu0 0.0
    %1689 = vmatpush1.msra.mxu0 0.0
    %1690 = vmatprep.subr.mxu0 0.0
    %1691 = vmatpush1.msra.mxu0 0.0
    %1692 = vmatprep.subr.mxu0 0.0
    %1693 = vmatpush1.msra.mxu0 0.0
    %1694 = vmatprep.subr.mxu0 0.0
    %1695 = vmatpush1.msra.mxu0 0.0
    %1696 = vmatprep.subr.mxu0 0.0
    %1697 = vmatpush1.msra.mxu0 0.0
    %1698 = vmatprep.subr.mxu0 0.0
    %1699 = vmatpush1.msra.mxu0 0.0
    %1700 = vmatprep.subr.mxu0 0.0
    %1701 = vmatpush1.msra.mxu0 0.0
    %1702 = vmatprep.subr.mxu0 0.0
    %1703 = vmatpush1.msra.mxu0 0.0
    %1704 = vmatprep.subr.mxu0 0.0
    %1705 = vmatpush1.msra.mxu0 0.0
    %1706 = vmatprep.subr.mxu0 0.0
    %1707 = vmatpush1.msra.mxu0 0.0
    %1708 = vmatprep.subr.mxu0 0.0
    %1709 = vmatpush1.msra.mxu0 0.0
    %1710 = vmatprep.subr.mxu0 0.0
    %1711 = vmatpush1.msra.mxu0 0.0
    %1712 = vmatprep.subr.mxu0 0.0
    %1713 = vmatpush1.msra.mxu0 0.0
    %1714 = vmatprep.subr.mxu0 0.0
    %1715 = vmatpush1.msra.mxu0 0.0
    %1716 = vmatprep.subr.mxu0 0.0
    %1717 = vmatpush1.msra.mxu0 0.0
    %1718 = vmatprep.subr.mxu0 0.0
    %1719 = vmatpush1.msra.mxu0 0.0
    %1720 = vmatprep.subr.mxu0 0.0
    %1721 = vmatpush1.msra.mxu0 0.0
    %1722 = vmatprep.subr.mxu0 0.0
    %1723 = vmatpush1.msra.mxu0 0.0
    %1724 = vmatprep.subr.mxu0 0.0
    %1725 = vmatpush1.msra.mxu0 0.0
    %1726 = vmatprep.subr.mxu0 0.0
    %1727 = vmatpush1.msra.mxu0 0.0
    %1728 = vmatprep.subr.mxu0 0.0
    %1729 = vmatpush1.msra.mxu0 0.0
    %1730 = vmatprep.subr.mxu0 0.0
    %1731 = vmatpush1.msra.mxu0 0.0
    %1732 = vmatprep.subr.mxu0 0.0
    %1733 = vmatpush1.msra.mxu0 0.0
    %1734 = vmatprep.mubr.f32.mxu0 0.0
    %v1735 = vand.u32 %v922, 4294901760
    %1736 = vmatmul.mubr.f32.gmra.mrb[0].mxu0 %v1735
    %v1737 = vpop.f32.mrb[0].mxu0
    %v1738 = vadd.f32 %v1617, %v1737
    %v1739 = vpop.f32.mrb[0].mxu0
    %1740 = vmatprep.mubr.f32.mxu0 0.0
    %v1741 = vand.u32 %v925, 4294901760
    %1742 = vmatmul.mubr.f32.gmra.mrb[0].mxu0 %v1741
    %v1743 = vpop.f32.mrb[0].mxu0
    %v1744 = vadd.f32 %v1623, %v1743
    %v1745 = vpop.f32.mrb[0].mxu0
    %1746 = vmatprep.mubr.f32.mxu0 0.0
    %v1747 = vand.u32 %v928, 4294901760
    %1748 = vmatmul.mubr.f32.gmra.mrb[0].mxu0 %v1747
    %v1749 = vpop.f32.mrb[0].mxu0
    %v1750 = vadd.f32 %v1629, %v1749
    %v1751 = vpop.f32.mrb[0].mxu0
    %1752 = vmatprep.mubr.f32.mxu0 0.0
    %v1753 = vand.u32 %v931, 4294901760
    %1754 = vmatmul.mubr.f32.gmra.mrb[0].mxu0 %v1753
    %v1755 = vpop.f32.mrb[0].mxu0
    %v1756 = vadd.f32 %v1635, %v1755
    %v1757 = vpop.f32.mrb[0].mxu0
    %1758 = vmatprep.mubr.f32.mxu0 0.0
    %v1759 = vand.u32 %v934, 4294901760
    %1760 = vmatmul.mubr.f32.gmra.mrb[0].mxu0 %v1759
    %v1761 = vpop.f32.mrb[0].mxu0
    %v1762 = vadd.f32 %v1641, %v1761
    %v1763 = vpop.f32.mrb[0].mxu0
    %1764 = vmatprep.mubr.f32.mxu0 0.0
    %v1765 = vand.u32 %v937, 4294901760
    %1766 = vmatmul.mubr.f32.gmra.mrb[0].mxu0 %v1765
    %v1767 = vpop.f32.mrb[0].mxu0
    %v1768 = vadd.f32 %v1647, %v1767
    %v1769 = vpop.f32.mrb[0].mxu0
    %1770 = vmatprep.mubr.f32.mxu0 0.0
    %v1771 = vand.u32 %v940, 4294901760
    %1772 = vmatmul.mubr.f32.gmra.mrb[0].mxu0 %v1771
    %v1773 = vpop.f32.mrb[0].mxu0
    %v1774 = vadd.f32 %v1653, %v1773
    %v1775 = vpop.f32.mrb[0].mxu0
    %1776 = vmatprep.mubr.f32.mxu0 0.0
    %v1777 = vand.u32 %v943, 4294901760
    %1778 = vmatmul.mubr.f32.gmra.mrb[0].mxu0 %v1777
    %v1779 = vpop.f32.mrb[0].mxu0
    %v1780 = vadd.f32 %v1659, %v1779
    %v1781 = vpop.f32.mrb[0].mxu0
    %1782 = vdwg.mxu0
    %v1783 = vmax.f32 %v1738, 0.0
    %v1784 = vmax.f32 %v1744, 0.0
    %v1785 = vmax.f32 %v1750, 0.0
    %v1786 = vmax.f32 %v1756, 0.0
    %v1787 = vmax.f32 %v1762, 0.0
    %v1788 = vmax.f32 %v1768, 0.0
    %v1789 = vmax.f32 %v1774, 0.0
    %v1790 = vmax.f32 %v1780, 0.0
    %v1791 = vld [vmem:[%s5] sm:$0xf]
    %v1792 = vld [vmem:[%s6] sm:$0xf]
    %1794 = vset.pattern.permute.xlu0 0
    %1795 = vperm.xlu0 %1794, %v1792
    %v1796 = vpop.permute.xlu0 %1795
    %v1799 = vsel %vm920, %v1791, 0
    %1801 = vmatprep.subr.mxu0 0.0
    %v1802 = vand.u32 %v1783, 4294901760
    %1803 = vmatpush1.msra.mxu0 %v1802
    %1804 = vmatprep.subr.mxu0 0.0
    %v1805 = vand.u32 %v1784, 4294901760
    %1806 = vmatpush1.msra.mxu0 %v1805
    %1807 = vmatprep.subr.mxu0 0.0
    %v1808 = vand.u32 %v1785, 4294901760
    %1809 = vmatpush1.msra.mxu0 %v1808
    %1810 = vmatprep.subr.mxu0 0.0
    %v1811 = vand.u32 %v1786, 4294901760
    %1812 = vmatpush1.msra.mxu0 %v1811
    %1813 = vmatprep.subr.mxu0 0.0
    %v1814 = vand.u32 %v1787, 4294901760
    %1815 = vmatpush1.msra.mxu0 %v1814
    %1816 = vmatprep.subr.mxu0 0.0
    %v1817 = vand.u32 %v1788, 4294901760
    %1818 = vmatpush1.msra.mxu0 %v1817
    %1819 = vmatprep.subr.mxu0 0.0
    %v1820 = vand.u32 %v1789, 4294901760
    %1821 = vmatpush1.msra.mxu0 %v1820
    %1822 = vmatprep.subr.mxu0 0.0
    %v1823 = vand.u32 %v1790, 4294901760
    %1824 = vmatpush1.msra.mxu0 %v1823
    %1825 = vmatprep.subr.mxu0 0.0
    %1826 = vmatpush1.msra.mxu0 0.0
    %1827 = vmatprep.subr.mxu0 0.0
    %1828 = vmatpush1.msra.mxu0 0.0
    %1829 = vmatprep.subr.mxu0 0.0
    %1830 = vmatpush1.msra.mxu0 0.0
    %1831 = vmatprep.subr.mxu0 0.0
    %1832 = vmatpush1.msra.mxu0 0.0
    %1833 = vmatprep.subr.mxu0 0.0
    %1834 = vmatpush1.msra.mxu0 0.0
    %1835 = vmatprep.subr.mxu0 0.0
    %1836 = vmatpush1.msra.mxu0 0.0
    %1837 = vmatprep.subr.mxu0 0.0
    %1838 = vmatpush1.msra.mxu0 0.0
    %1839 = vmatprep.subr.mxu0 0.0
    %1840 = vmatpush1.msra.mxu0 0.0
    %1841 = vmatprep.subr.mxu0 0.0
    %1842 = vmatpush1.msra.mxu0 0.0
    %1843 = vmatprep.subr.mxu0 0.0
    %1844 = vmatpush1.msra.mxu0 0.0
    %1845 = vmatprep.subr.mxu0 0.0
    %1846 = vmatpush1.msra.mxu0 0.0
    %1847 = vmatprep.subr.mxu0 0.0
    %1848 = vmatpush1.msra.mxu0 0.0
    %1849 = vmatprep.subr.mxu0 0.0
    %1850 = vmatpush1.msra.mxu0 0.0
    %1851 = vmatprep.subr.mxu0 0.0
    %1852 = vmatpush1.msra.mxu0 0.0
    %1853 = vmatprep.subr.mxu0 0.0
    %1854 = vmatpush1.msra.mxu0 0.0
    %1855 = vmatprep.subr.mxu0 0.0
    %1856 = vmatpush1.msra.mxu0 0.0
    %1857 = vmatprep.subr.mxu0 0.0
    %1858 = vmatpush1.msra.mxu0 0.0
    %1859 = vmatprep.subr.mxu0 0.0
    %1860 = vmatpush1.msra.mxu0 0.0
    %1861 = vmatprep.subr.mxu0 0.0
    %1862 = vmatpush1.msra.mxu0 0.0
    %1863 = vmatprep.subr.mxu0 0.0
    %1864 = vmatpush1.msra.mxu0 0.0
    %1865 = vmatprep.subr.mxu0 0.0
    %1866 = vmatpush1.msra.mxu0 0.0
    %1867 = vmatprep.subr.mxu0 0.0
    %1868 = vmatpush1.msra.mxu0 0.0
    %1869 = vmatprep.subr.mxu0 0.0
    %1870 = vmatpush1.msra.mxu0 0.0
    %1871 = vmatprep.subr.mxu0 0.0
    %1872 = vmatpush1.msra.mxu0 0.0
    %1873 = vmatprep.mubr.f32.mxu0 0.0
    %v1874 = vand.u32 %v1799, 4294901760
    %v1875 = vsub.f32 %v1799, %v1874
    %v1876 = vand.u32 %v1875, 4294901760
    %v1877 = vsub.f32 %v1875, %v1876
    %v1878 = vand.u32 %v1877, 4294901760
    %1879 = vmatmul.mubr.f32.gmra.mrb[0].mxu0 %v1878
    %v1880 = vpop.f32.mrb[0].mxu0
    %v1881 = vadd.f32 %v1796, %v1880
    %v1882 = vpop.f32.mrb[0].mxu0
    %1883 = vdwg.mxu0
    %1884 = vmatprep.subr.mxu0 0.0
    %v1885 = vand.u32 %v1783, 4294901760
    %v1886 = vsub.f32 %v1783, %v1885
    %v1887 = vand.u32 %v1886, 4294901760
    %v1888 = vsub.f32 %v1886, %v1887
    %v1889 = vand.u32 %v1888, 4294901760
    %1890 = vmatpush1.msra.mxu0 %v1889
    %1891 = vmatprep.subr.mxu0 0.0
    %v1892 = vand.u32 %v1784, 4294901760
    %v1893 = vsub.f32 %v1784, %v1892
    %v1894 = vand.u32 %v1893, 4294901760
    %v1895 = vsub.f32 %v1893, %v1894
    %v1896 = vand.u32 %v1895, 4294901760
    %1897 = vmatpush1.msra.mxu0 %v1896
    %1898 = vmatprep.subr.mxu0 0.0
    %v1899 = vand.u32 %v1785, 4294901760
    %v1900 = vsub.f32 %v1785, %v1899
    %v1901 = vand.u32 %v1900, 4294901760
    %v1902 = vsub.f32 %v1900, %v1901
    %v1903 = vand.u32 %v1902, 4294901760
    %1904 = vmatpush1.msra.mxu0 %v1903
    %1905 = vmatprep.subr.mxu0 0.0
    %v1906 = vand.u32 %v1786, 4294901760
    %v1907 = vsub.f32 %v1786, %v1906
    %v1908 = vand.u32 %v1907, 4294901760
    %v1909 = vsub.f32 %v1907, %v1908
    %v1910 = vand.u32 %v1909, 4294901760
    %1911 = vmatpush1.msra.mxu0 %v1910
    %1912 = vmatprep.subr.mxu0 0.0
    %v1913 = vand.u32 %v1787, 4294901760
    %v1914 = vsub.f32 %v1787, %v1913
    %v1915 = vand.u32 %v1914, 4294901760
    %v1916 = vsub.f32 %v1914, %v1915
    %v1917 = vand.u32 %v1916, 4294901760
    %1918 = vmatpush1.msra.mxu0 %v1917
    %1919 = vmatprep.subr.mxu0 0.0
    %v1920 = vand.u32 %v1788, 4294901760
    %v1921 = vsub.f32 %v1788, %v1920
    %v1922 = vand.u32 %v1921, 4294901760
    %v1923 = vsub.f32 %v1921, %v1922
    %v1924 = vand.u32 %v1923, 4294901760
    %1925 = vmatpush1.msra.mxu0 %v1924
    %1926 = vmatprep.subr.mxu0 0.0
    %v1927 = vand.u32 %v1789, 4294901760
    %v1928 = vsub.f32 %v1789, %v1927
    %v1929 = vand.u32 %v1928, 4294901760
    %v1930 = vsub.f32 %v1928, %v1929
    %v1931 = vand.u32 %v1930, 4294901760
    %1932 = vmatpush1.msra.mxu0 %v1931
    %1933 = vmatprep.subr.mxu0 0.0
    %v1934 = vand.u32 %v1790, 4294901760
    %v1935 = vsub.f32 %v1790, %v1934
    %v1936 = vand.u32 %v1935, 4294901760
    %v1937 = vsub.f32 %v1935, %v1936
    %v1938 = vand.u32 %v1937, 4294901760
    %1939 = vmatpush1.msra.mxu0 %v1938
    %1940 = vmatprep.subr.mxu0 0.0
    %1941 = vmatpush1.msra.mxu0 0.0
    %1942 = vmatprep.subr.mxu0 0.0
    %1943 = vmatpush1.msra.mxu0 0.0
    %1944 = vmatprep.subr.mxu0 0.0
    %1945 = vmatpush1.msra.mxu0 0.0
    %1946 = vmatprep.subr.mxu0 0.0
    %1947 = vmatpush1.msra.mxu0 0.0
    %1948 = vmatprep.subr.mxu0 0.0
    %1949 = vmatpush1.msra.mxu0 0.0
    %1950 = vmatprep.subr.mxu0 0.0
    %1951 = vmatpush1.msra.mxu0 0.0
    %1952 = vmatprep.subr.mxu0 0.0
    %1953 = vmatpush1.msra.mxu0 0.0
    %1954 = vmatprep.subr.mxu0 0.0
    %1955 = vmatpush1.msra.mxu0 0.0
    %1956 = vmatprep.subr.mxu0 0.0
    %1957 = vmatpush1.msra.mxu0 0.0
    %1958 = vmatprep.subr.mxu0 0.0
    %1959 = vmatpush1.msra.mxu0 0.0
    %1960 = vmatprep.subr.mxu0 0.0
    %1961 = vmatpush1.msra.mxu0 0.0
    %1962 = vmatprep.subr.mxu0 0.0
    %1963 = vmatpush1.msra.mxu0 0.0
    %1964 = vmatprep.subr.mxu0 0.0
    %1965 = vmatpush1.msra.mxu0 0.0
    %1966 = vmatprep.subr.mxu0 0.0
    %1967 = vmatpush1.msra.mxu0 0.0
    %1968 = vmatprep.subr.mxu0 0.0
    %1969 = vmatpush1.msra.mxu0 0.0
    %1970 = vmatprep.subr.mxu0 0.0
    %1971 = vmatpush1.msra.mxu0 0.0
    %1972 = vmatprep.subr.mxu0 0.0
    %1973 = vmatpush1.msra.mxu0 0.0
    %1974 = vmatprep.subr.mxu0 0.0
    %1975 = vmatpush1.msra.mxu0 0.0
    %1976 = vmatprep.subr.mxu0 0.0
    %1977 = vmatpush1.msra.mxu0 0.0
    %1978 = vmatprep.subr.mxu0 0.0
    %1979 = vmatpush1.msra.mxu0 0.0
    %1980 = vmatprep.subr.mxu0 0.0
    %1981 = vmatpush1.msra.mxu0 0.0
    %1982 = vmatprep.subr.mxu0 0.0
    %1983 = vmatpush1.msra.mxu0 0.0
    %1984 = vmatprep.subr.mxu0 0.0
    %1985 = vmatpush1.msra.mxu0 0.0
    %1986 = vmatprep.subr.mxu0 0.0
    %1987 = vmatpush1.msra.mxu0 0.0
    %1988 = vmatprep.mubr.f32.mxu0 0.0
    %v1989 = vand.u32 %v1799, 4294901760
    %1990 = vmatmul.mubr.f32.gmra.mrb[0].mxu0 %v1989
    %v1991 = vpop.f32.mrb[0].mxu0
    %v1992 = vadd.f32 %v1881, %v1991
    %v1993 = vpop.f32.mrb[0].mxu0
    %1994 = vdwg.mxu0
    %1995 = vmatprep.subr.mxu0 0.0
    %v1996 = vand.u32 %v1783, 4294901760
    %v1997 = vsub.f32 %v1783, %v1996
    %1998 = vmatpush1.msra.mxu0 %v1997
    %1999 = vmatprep.subr.mxu0 0.0
    %v2000 = vand.u32 %v1784, 4294901760
    %v2001 = vsub.f32 %v1784, %v2000
    %2002 = vmatpush1.msra.mxu0 %v2001
    %2003 = vmatprep.subr.mxu0 0.0
    %v2004 = vand.u32 %v1785, 4294901760
    %v2005 = vsub.f32 %v1785, %v2004
    %2006 = vmatpush1.msra.mxu0 %v2005
    %2007 = vmatprep.subr.mxu0 0.0
    %v2008 = vand.u32 %v1786, 4294901760
    %v2009 = vsub.f32 %v1786, %v2008
    %2010 = vmatpush1.msra.mxu0 %v2009
    %2011 = vmatprep.subr.mxu0 0.0
    %v2012 = vand.u32 %v1787, 4294901760
    %v2013 = vsub.f32 %v1787, %v2012
    %2014 = vmatpush1.msra.mxu0 %v2013
    %2015 = vmatprep.subr.mxu0 0.0
    %v2016 = vand.u32 %v1788, 4294901760
    %v2017 = vsub.f32 %v1788, %v2016
    %2018 = vmatpush1.msra.mxu0 %v2017
    %2019 = vmatprep.subr.mxu0 0.0
    %v2020 = vand.u32 %v1789, 4294901760
    %v2021 = vsub.f32 %v1789, %v2020
    %2022 = vmatpush1.msra.mxu0 %v2021
    %2023 = vmatprep.subr.mxu0 0.0
    %v2024 = vand.u32 %v1790, 4294901760
    %v2025 = vsub.f32 %v1790, %v2024
    %2026 = vmatpush1.msra.mxu0 %v2025
    %2027 = vmatprep.subr.mxu0 0.0
    %2028 = vmatpush1.msra.mxu0 0.0
    %2029 = vmatprep.subr.mxu0 0.0
    %2030 = vmatpush1.msra.mxu0 0.0
    %2031 = vmatprep.subr.mxu0 0.0
    %2032 = vmatpush1.msra.mxu0 0.0
    %2033 = vmatprep.subr.mxu0 0.0
    %2034 = vmatpush1.msra.mxu0 0.0
    %2035 = vmatprep.subr.mxu0 0.0
    %2036 = vmatpush1.msra.mxu0 0.0
    %2037 = vmatprep.subr.mxu0 0.0
    %2038 = vmatpush1.msra.mxu0 0.0
    %2039 = vmatprep.subr.mxu0 0.0
    %2040 = vmatpush1.msra.mxu0 0.0
    %2041 = vmatprep.subr.mxu0 0.0
    %2042 = vmatpush1.msra.mxu0 0.0
    %2043 = vmatprep.subr.mxu0 0.0
    %2044 = vmatpush1.msra.mxu0 0.0
    %2045 = vmatprep.subr.mxu0 0.0
    %2046 = vmatpush1.msra.mxu0 0.0
    %2047 = vmatprep.subr.mxu0 0.0
    %2048 = vmatpush1.msra.mxu0 0.0
    %2049 = vmatprep.subr.mxu0 0.0
    %2050 = vmatpush1.msra.mxu0 0.0
    %2051 = vmatprep.subr.mxu0 0.0
    %2052 = vmatpush1.msra.mxu0 0.0
    %2053 = vmatprep.subr.mxu0 0.0
    %2054 = vmatpush1.msra.mxu0 0.0
    %2055 = vmatprep.subr.mxu0 0.0
    %2056 = vmatpush1.msra.mxu0 0.0
    %2057 = vmatprep.subr.mxu0 0.0
    %2058 = vmatpush1.msra.mxu0 0.0
    %2059 = vmatprep.subr.mxu0 0.0
    %2060 = vmatpush1.msra.mxu0 0.0
    %2061 = vmatprep.subr.mxu0 0.0
    %2062 = vmatpush1.msra.mxu0 0.0
    %2063 = vmatprep.subr.mxu0 0.0
    %2064 = vmatpush1.msra.mxu0 0.0
    %2065 = vmatprep.subr.mxu0 0.0
    %2066 = vmatpush1.msra.mxu0 0.0
    %2067 = vmatprep.subr.mxu0 0.0
    %2068 = vmatpush1.msra.mxu0 0.0
    %2069 = vmatprep.subr.mxu0 0.0
    %2070 = vmatpush1.msra.mxu0 0.0
    %2071 = vmatprep.subr.mxu0 0.0
    %2072 = vmatpush1.msra.mxu0 0.0
    %2073 = vmatprep.subr.mxu0 0.0
    %2074 = vmatpush1.msra.mxu0 0.0
    %2075 = vmatprep.mubr.f32.mxu0 0.0
    %v2076 = vand.u32 %v1799, 4294901760
    %v2077 = vsub.f32 %v1799, %v2076
    %2078 = vmatmul.mubr.f32.gmra.mrb[0].mxu0 %v2077
    %v2079 = vpop.f32.mrb[0].mxu0
    %v2080 = vadd.f32 %v1992, %v2079
    %v2081 = vpop.f32.mrb[0].mxu0
    %2082 = vdwg.mxu0
    %2083 = vmatprep.subr.mxu0 0.0
    %v2084 = vand.u32 %v1783, 4294901760
    %2085 = vmatpush1.msra.mxu0 %v2084
    %2086 = vmatprep.subr.mxu0 0.0
    %v2087 = vand.u32 %v1784, 4294901760
    %2088 = vmatpush1.msra.mxu0 %v2087
    %2089 = vmatprep.subr.mxu0 0.0
    %v2090 = vand.u32 %v1785, 4294901760
    %2091 = vmatpush1.msra.mxu0 %v2090
    %2092 = vmatprep.subr.mxu0 0.0
    %v2093 = vand.u32 %v1786, 4294901760
    %2094 = vmatpush1.msra.mxu0 %v2093
    %2095 = vmatprep.subr.mxu0 0.0
    %v2096 = vand.u32 %v1787, 4294901760
    %2097 = vmatpush1.msra.mxu0 %v2096
    %2098 = vmatprep.subr.mxu0 0.0
    %v2099 = vand.u32 %v1788, 4294901760
    %2100 = vmatpush1.msra.mxu0 %v2099
    %2101 = vmatprep.subr.mxu0 0.0
    %v2102 = vand.u32 %v1789, 4294901760
    %2103 = vmatpush1.msra.mxu0 %v2102
    %2104 = vmatprep.subr.mxu0 0.0
    %v2105 = vand.u32 %v1790, 4294901760
    %2106 = vmatpush1.msra.mxu0 %v2105
    %2107 = vmatprep.subr.mxu0 0.0
    %2108 = vmatpush1.msra.mxu0 0.0
    %2109 = vmatprep.subr.mxu0 0.0
    %2110 = vmatpush1.msra.mxu0 0.0
    %2111 = vmatprep.subr.mxu0 0.0
    %2112 = vmatpush1.msra.mxu0 0.0
    %2113 = vmatprep.subr.mxu0 0.0
    %2114 = vmatpush1.msra.mxu0 0.0
    %2115 = vmatprep.subr.mxu0 0.0
    %2116 = vmatpush1.msra.mxu0 0.0
    %2117 = vmatprep.subr.mxu0 0.0
    %2118 = vmatpush1.msra.mxu0 0.0
    %2119 = vmatprep.subr.mxu0 0.0
    %2120 = vmatpush1.msra.mxu0 0.0
    %2121 = vmatprep.subr.mxu0 0.0
    %2122 = vmatpush1.msra.mxu0 0.0
    %2123 = vmatprep.subr.mxu0 0.0
    %2124 = vmatpush1.msra.mxu0 0.0
    %2125 = vmatprep.subr.mxu0 0.0
    %2126 = vmatpush1.msra.mxu0 0.0
    %2127 = vmatprep.subr.mxu0 0.0
    %2128 = vmatpush1.msra.mxu0 0.0
    %2129 = vmatprep.subr.mxu0 0.0
    %2130 = vmatpush1.msra.mxu0 0.0
    %2131 = vmatprep.subr.mxu0 0.0
    %2132 = vmatpush1.msra.mxu0 0.0
    %2133 = vmatprep.subr.mxu0 0.0
    %2134 = vmatpush1.msra.mxu0 0.0
    %2135 = vmatprep.subr.mxu0 0.0
    %2136 = vmatpush1.msra.mxu0 0.0
    %2137 = vmatprep.subr.mxu0 0.0
    %2138 = vmatpush1.msra.mxu0 0.0
    %2139 = vmatprep.subr.mxu0 0.0
    %2140 = vmatpush1.msra.mxu0 0.0
    %2141 = vmatprep.subr.mxu0 0.0
    %2142 = vmatpush1.msra.mxu0 0.0
    %2143 = vmatprep.subr.mxu0 0.0
    %2144 = vmatpush1.msra.mxu0 0.0
    %2145 = vmatprep.subr.mxu0 0.0
    %2146 = vmatpush1.msra.mxu0 0.0
    %2147 = vmatprep.subr.mxu0 0.0
    %2148 = vmatpush1.msra.mxu0 0.0
    %2149 = vmatprep.subr.mxu0 0.0
    %2150 = vmatpush1.msra.mxu0 0.0
    %2151 = vmatprep.subr.mxu0 0.0
    %2152 = vmatpush1.msra.mxu0 0.0
    %2153 = vmatprep.subr.mxu0 0.0
    %2154 = vmatpush1.msra.mxu0 0.0
    %2155 = vmatprep.mubr.f32.mxu0 0.0
    %v2156 = vand.u32 %v1799, 4294901760
    %v2157 = vsub.f32 %v1799, %v2156
    %v2158 = vand.u32 %v2157, 4294901760
    %2159 = vmatmul.mubr.f32.gmra.mrb[0].mxu0 %v2158
    %v2160 = vpop.f32.mrb[0].mxu0
    %v2161 = vadd.f32 %v2080, %v2160
    %v2162 = vpop.f32.mrb[0].mxu0
    %2163 = vdwg.mxu0
    %2164 = vmatprep.subr.mxu0 0.0
    %v2165 = vand.u32 %v1783, 4294901760
    %v2166 = vsub.f32 %v1783, %v2165
    %v2167 = vand.u32 %v2166, 4294901760
    %2168 = vmatpush1.msra.mxu0 %v2167
    %2169 = vmatprep.subr.mxu0 0.0
    %v2170 = vand.u32 %v1784, 4294901760
    %v2171 = vsub.f32 %v1784, %v2170
    %v2172 = vand.u32 %v2171, 4294901760
    %2173 = vmatpush1.msra.mxu0 %v2172
    %2174 = vmatprep.subr.mxu0 0.0
    %v2175 = vand.u32 %v1785, 4294901760
    %v2176 = vsub.f32 %v1785, %v2175
    %v2177 = vand.u32 %v2176, 4294901760
    %2178 = vmatpush1.msra.mxu0 %v2177
    %2179 = vmatprep.subr.mxu0 0.0
    %v2180 = vand.u32 %v1786, 4294901760
    %v2181 = vsub.f32 %v1786, %v2180
    %v2182 = vand.u32 %v2181, 4294901760
    %2183 = vmatpush1.msra.mxu0 %v2182
    %2184 = vmatprep.subr.mxu0 0.0
    %v2185 = vand.u32 %v1787, 4294901760
    %v2186 = vsub.f32 %v1787, %v2185
    %v2187 = vand.u32 %v2186, 4294901760
    %2188 = vmatpush1.msra.mxu0 %v2187
    %2189 = vmatprep.subr.mxu0 0.0
    %v2190 = vand.u32 %v1788, 4294901760
    %v2191 = vsub.f32 %v1788, %v2190
    %v2192 = vand.u32 %v2191, 4294901760
    %2193 = vmatpush1.msra.mxu0 %v2192
    %2194 = vmatprep.subr.mxu0 0.0
    %v2195 = vand.u32 %v1789, 4294901760
    %v2196 = vsub.f32 %v1789, %v2195
    %v2197 = vand.u32 %v2196, 4294901760
    %2198 = vmatpush1.msra.mxu0 %v2197
    %2199 = vmatprep.subr.mxu0 0.0
    %v2200 = vand.u32 %v1790, 4294901760
    %v2201 = vsub.f32 %v1790, %v2200
    %v2202 = vand.u32 %v2201, 4294901760
    %2203 = vmatpush1.msra.mxu0 %v2202
    %2204 = vmatprep.subr.mxu0 0.0
    %2205 = vmatpush1.msra.mxu0 0.0
    %2206 = vmatprep.subr.mxu0 0.0
    %2207 = vmatpush1.msra.mxu0 0.0
    %2208 = vmatprep.subr.mxu0 0.0
    %2209 = vmatpush1.msra.mxu0 0.0
    %2210 = vmatprep.subr.mxu0 0.0
    %2211 = vmatpush1.msra.mxu0 0.0
    %2212 = vmatprep.subr.mxu0 0.0
    %2213 = vmatpush1.msra.mxu0 0.0
    %2214 = vmatprep.subr.mxu0 0.0
    %2215 = vmatpush1.msra.mxu0 0.0
    %2216 = vmatprep.subr.mxu0 0.0
    %2217 = vmatpush1.msra.mxu0 0.0
    %2218 = vmatprep.subr.mxu0 0.0
    %2219 = vmatpush1.msra.mxu0 0.0
    %2220 = vmatprep.subr.mxu0 0.0
    %2221 = vmatpush1.msra.mxu0 0.0
    %2222 = vmatprep.subr.mxu0 0.0
    %2223 = vmatpush1.msra.mxu0 0.0
    %2224 = vmatprep.subr.mxu0 0.0
    %2225 = vmatpush1.msra.mxu0 0.0
    %2226 = vmatprep.subr.mxu0 0.0
    %2227 = vmatpush1.msra.mxu0 0.0
    %2228 = vmatprep.subr.mxu0 0.0
    %2229 = vmatpush1.msra.mxu0 0.0
    %2230 = vmatprep.subr.mxu0 0.0
    %2231 = vmatpush1.msra.mxu0 0.0
    %2232 = vmatprep.subr.mxu0 0.0
    %2233 = vmatpush1.msra.mxu0 0.0
    %2234 = vmatprep.subr.mxu0 0.0
    %2235 = vmatpush1.msra.mxu0 0.0
    %2236 = vmatprep.subr.mxu0 0.0
    %2237 = vmatpush1.msra.mxu0 0.0
    %2238 = vmatprep.subr.mxu0 0.0
    %2239 = vmatpush1.msra.mxu0 0.0
    %2240 = vmatprep.subr.mxu0 0.0
    %2241 = vmatpush1.msra.mxu0 0.0
    %2242 = vmatprep.subr.mxu0 0.0
    %2243 = vmatpush1.msra.mxu0 0.0
    %2244 = vmatprep.subr.mxu0 0.0
    %2245 = vmatpush1.msra.mxu0 0.0
    %2246 = vmatprep.subr.mxu0 0.0
    %2247 = vmatpush1.msra.mxu0 0.0
    %2248 = vmatprep.subr.mxu0 0.0
    %2249 = vmatpush1.msra.mxu0 0.0
    %2250 = vmatprep.subr.mxu0 0.0
    %2251 = vmatpush1.msra.mxu0 0.0
    %2252 = vmatprep.mubr.f32.mxu0 0.0
    %v2253 = vand.u32 %v1799, 4294901760
    %2254 = vmatmul.mubr.f32.gmra.mrb[0].mxu0 %v2253
    %v2255 = vpop.f32.mrb[0].mxu0
    %v2256 = vadd.f32 %v2161, %v2255
    %v2257 = vpop.f32.mrb[0].mxu0
    %2258 = vdwg.mxu0
    %2259 = vmatprep.subr.mxu0 0.0
    %v2260 = vand.u32 %v1783, 4294901760
    %2261 = vmatpush1.msra.mxu0 %v2260
    %2262 = vmatprep.subr.mxu0 0.0
    %v2263 = vand.u32 %v1784, 4294901760
    %2264 = vmatpush1.msra.mxu0 %v2263
    %2265 = vmatprep.subr.mxu0 0.0
    %v2266 = vand.u32 %v1785, 4294901760
    %2267 = vmatpush1.msra.mxu0 %v2266
    %2268 = vmatprep.subr.mxu0 0.0
    %v2269 = vand.u32 %v1786, 4294901760
    %2270 = vmatpush1.msra.mxu0 %v2269
    %2271 = vmatprep.subr.mxu0 0.0
    %v2272 = vand.u32 %v1787, 4294901760
    %2273 = vmatpush1.msra.mxu0 %v2272
    %2274 = vmatprep.subr.mxu0 0.0
    %v2275 = vand.u32 %v1788, 4294901760
    %2276 = vmatpush1.msra.mxu0 %v2275
    %2277 = vmatprep.subr.mxu0 0.0
    %v2278 = vand.u32 %v1789, 4294901760
    %2279 = vmatpush1.msra.mxu0 %v2278
    %2280 = vmatprep.subr.mxu0 0.0
    %v2281 = vand.u32 %v1790, 4294901760
    %2282 = vmatpush1.msra.mxu0 %v2281
    %2283 = vmatprep.subr.mxu0 0.0
    %2284 = vmatpush1.msra.mxu0 0.0
    %2285 = vmatprep.subr.mxu0 0.0
    %2286 = vmatpush1.msra.mxu0 0.0
    %2287 = vmatprep.subr.mxu0 0.0
    %2288 = vmatpush1.msra.mxu0 0.0
    %2289 = vmatprep.subr.mxu0 0.0
    %2290 = vmatpush1.msra.mxu0 0.0
    %2291 = vmatprep.subr.mxu0 0.0
    %2292 = vmatpush1.msra.mxu0 0.0
    %2293 = vmatprep.subr.mxu0 0.0
    %2294 = vmatpush1.msra.mxu0 0.0
    %2295 = vmatprep.subr.mxu0 0.0
    %2296 = vmatpush1.msra.mxu0 0.0
    %2297 = vmatprep.subr.mxu0 0.0
    %2298 = vmatpush1.msra.mxu0 0.0
    %2299 = vmatprep.subr.mxu0 0.0
    %2300 = vmatpush1.msra.mxu0 0.0
    %2301 = vmatprep.subr.mxu0 0.0
    %2302 = vmatpush1.msra.mxu0 0.0
    %2303 = vmatprep.subr.mxu0 0.0
    %2304 = vmatpush1.msra.mxu0 0.0
    %2305 = vmatprep.subr.mxu0 0.0
    %2306 = vmatpush1.msra.mxu0 0.0
    %2307 = vmatprep.subr.mxu0 0.0
    %2308 = vmatpush1.msra.mxu0 0.0
    %2309 = vmatprep.subr.mxu0 0.0
    %2310 = vmatpush1.msra.mxu0 0.0
    %2311 = vmatprep.subr.mxu0 0.0
    %2312 = vmatpush1.msra.mxu0 0.0
    %2313 = vmatprep.subr.mxu0 0.0
    %2314 = vmatpush1.msra.mxu0 0.0
    %2315 = vmatprep.subr.mxu0 0.0
    %2316 = vmatpush1.msra.mxu0 0.0
    %2317 = vmatprep.subr.mxu0 0.0
    %2318 = vmatpush1.msra.mxu0 0.0
    %2319 = vmatprep.subr.mxu0 0.0
    %2320 = vmatpush1.msra.mxu0 0.0
    %2321 = vmatprep.subr.mxu0 0.0
    %2322 = vmatpush1.msra.mxu0 0.0
    %2323 = vmatprep.subr.mxu0 0.0
    %2324 = vmatpush1.msra.mxu0 0.0
    %2325 = vmatprep.subr.mxu0 0.0
    %2326 = vmatpush1.msra.mxu0 0.0
    %2327 = vmatprep.subr.mxu0 0.0
    %2328 = vmatpush1.msra.mxu0 0.0
    %2329 = vmatprep.subr.mxu0 0.0
    %2330 = vmatpush1.msra.mxu0 0.0
    %2331 = vmatprep.mubr.f32.mxu0 0.0
    %v2332 = vand.u32 %v1799, 4294901760
    %2333 = vmatmul.mubr.f32.gmra.mrb[0].mxu0 %v2332
    %v2334 = vpop.f32.mrb[0].mxu0
    %v2335 = vadd.f32 %v2256, %v2334
    %v2336 = vpop.f32.mrb[0].mxu0
    %2337 = vdwg.mxu0
    %2338 = vst [vmem:[#allocation2] sm:$0xf] %v2335
    // Predicated region
    $region30: #{tpu_custom_call.1} parent=1 // pred_check
      _
    $region31: #{tpu_custom_call.1} parent=1 // pred_check_branch
      %2340 = sbr.rel (0) target = $region33
    $region32: #{tpu_custom_call.1} parent=1 // pred_region
      %s2342 = ssub.s32 64, 64
      %2343 = vsyncadd [#allocation3], %s2342
      %s2345 = sshll.u32 [#allocation2], 4
      %s2346 = int_to_ptr.vmem [resolvable:$true] %s2345
      %2348 = dma.vmem_to_hbm [thread:$0]  %s2346, 64, %s7, [#allocation3]
    $region33: #{tpu_custom_call.1} parent=1 // pred_fallthru
      _
    // Predicated region
    $region34: #{tpu_custom_call.1} parent=1 // pred_check
      _
    $region35: #{tpu_custom_call.1} parent=1 // pred_check_branch
      %2350 = sbr.rel (0) target = $region37
    $region36: #{tpu_custom_call.1} parent=1 // pred_region
      %2351 = dma.done [#allocation3], 64
    $region37: #{tpu_custom_call.1} parent=1 // pred_fallthru
      _
    %2352 = vsyncpa [#allocation3], 1

</llo_original>
